<compile_context>
chip_gen: v5e
topology: v5e:2x2
jax: 0.10.0
libtpu: 0.0.40
codegen_flags: <defaults>
</compile_context>

<pallas_src>
import functools

import jax
import jax.numpy as jnp
from jax.experimental import pallas as pl
from jax.experimental.pallas import tpu as pltpu


def _round_up(x, m):
    return (x + m - 1) // m * m


# ---------------------------------------------------------------------------
# Kernel A: lm-head logits  (vocab-tiled pure weight stream, no K reduction)
# ---------------------------------------------------------------------------
def lm_head_kernel(last_ref, wlm_ref, logits_ref):
    # bf16 x bf16 on the MXU, f32 result.  `last` is resident across the grid.
    logits_ref[...] = jnp.dot(last_ref[...], wlm_ref[...],
                              preferred_element_type=jnp.float32)


# ---------------------------------------------------------------------------
# Kernel B: seq-tiled mean-pool + value head MLP
# ---------------------------------------------------------------------------
def value_head_kernel(hidden_ref, w1_ref, b1_ref, w2_ref, b2_ref,
                      value_ref, sum_ref, *, seq_len):
    s = pl.program_id(0)

    @pl.when(s == 0)
    def _():
        sum_ref[...] = jnp.zeros_like(sum_ref)

    # Accumulate the sequence-sum of this S block in f32.
    sum_ref[...] += jnp.sum(hidden_ref[...].astype(jnp.float32), axis=1)

    @pl.when(s == pl.num_programs(0) - 1)
    def _():
        # mean-pool -> Linear(H,128) -> tanh -> Linear(128,1)
        pooled = sum_ref[...] * (1.0 / seq_len)                       # (B, H) f32
        h1 = jnp.tanh(jnp.dot(pooled, w1_ref[...],
                              preferred_element_type=jnp.float32) + b1_ref[...])
        # N=1 matmul replaced by a VPU multiply + row reduction (MXU stays free).
        value_ref[...] = (jnp.sum(h1 * w2_ref[...], axis=-1, keepdims=True)
                          + b2_ref[...])


# ---------------------------------------------------------------------------
# Kernel C: softmax over the full vocab row (exact divide -> rows sum to 1)
# ---------------------------------------------------------------------------
def softmax_kernel(logits_ref, probs_ref):
    x = logits_ref[...]                                   # (B_pad, V) f32, VMEM
    m = jnp.max(x, axis=-1, keepdims=True)
    e = jnp.exp(x - m)
    l = jnp.sum(e, axis=-1, keepdims=True)
    probs_ref[...] = e / l                                # exact, not approx-recip


# ---------------------------------------------------------------------------
# Wrapper
# ---------------------------------------------------------------------------
@functools.partial(jax.jit, static_argnames=("tn", "ts"))
def actor_critic_forward(hidden, w_lm, w1, b1, w2, b2, *, tn=512, ts=128):
    """hidden: (B, S, H).  w_lm: (H, V), ideally stored in bf16 by the caller.

    Returns (action_probs (B, V) f32, value (B, 1) f32)."""
    B, S, H = hidden.shape
    V = w_lm.shape[1]
    VH = w1.shape[1]

    tn = min(tn, V)
    ts = min(ts, S)
    assert V % tn == 0 and S % ts == 0 and ts % 8 == 0

    B_pad = _round_up(max(B, 8), 8)        # sublane-align the tiny policy-path M

    # ---- policy path: only the last-token slice (B, H) is cast/padded (tiny).
    last = jnp.pad(hidden[:, -1, :].astype(jnp.bfloat16),
                   ((0, B_pad - B), (0, 0)))                      # (Bp, H) bf16
    wlm_bf16 = w_lm.astype(jnp.bfloat16)   # no-op when caller already stores bf16

    nv = V // tn
    logits = pl.pallas_call(
        lm_head_kernel,
        out_shape=jax.ShapeDtypeStruct((B_pad, V), jnp.float32),
        grid_spec=pltpu.PrefetchScalarGridSpec(
            num_scalar_prefetch=0,
            grid=(nv,),                                   # vocab tiles only
            in_specs=[pl.BlockSpec((B_pad, H), lambda j: (0, 0)),   # resident
                      pl.BlockSpec((H, tn), lambda j: (0, j))],     # streamed
            out_specs=pl.BlockSpec((B_pad, tn), lambda j: (0, j))),
        compiler_params=pltpu.CompilerParams(
            # v7x note: pltpu.CORE_PARALLEL here shards vocab tiles across its
            # two TensorCores; "parallel" kept for portability to v5e/v6e.
            dimension_semantics=("parallel",),
            vmem_limit_bytes=48 * 1024 * 1024),
    )(last, wlm_bf16)

    # softmax finalize on the VMEM-resident logits block (1 MB even at V=32k).
    probs = pl.pallas_call(
        softmax_kernel,
        out_shape=jax.ShapeDtypeStruct((B_pad, V), jnp.float32),
    )(logits)

    # ---- value path: stream hidden directly (no padded bf16 wrapper copy).
    w2_row = w2.reshape(1, VH).astype(jnp.float32)
    ns = S // ts
    value = pl.pallas_call(
        functools.partial(value_head_kernel, seq_len=float(S)),
        out_shape=jax.ShapeDtypeStruct((B, 1), jnp.float32),
        grid_spec=pltpu.PrefetchScalarGridSpec(
            num_scalar_prefetch=0,
            grid=(ns,),
            in_specs=[pl.BlockSpec((B, ts, H), lambda s: (0, s, 0)),
                      pl.BlockSpec((H, VH), lambda s: (0, 0)),
                      pl.BlockSpec((1, VH), lambda s: (0, 0)),
                      pl.BlockSpec((1, VH), lambda s: (0, 0)),
                      pl.BlockSpec((1, 1), lambda s: (0, 0))],
            out_specs=pl.BlockSpec((B, 1), lambda s: (0, 0)),
            scratch_shapes=[pltpu.VMEM((B, H), jnp.float32)]),
        compiler_params=pltpu.CompilerParams(
            dimension_semantics=("arbitrary",),
            vmem_limit_bytes=48 * 1024 * 1024),
    )(hidden, w1, b1, w2_row, b2)

    return probs[:B], value


if __name__ == "__main__":
    # Small shapes that still exercise the grids (nv=2 vocab tiles, ns=2 seq
    # tiles) and respect (8, 128) tiling with the default tn=512 / ts=128.
    B, S = 2, 256
    H = 256          # model hidden size
    V = 1024         # vocab size (softmax axis)
    VH = 128         # value_head intermediate (nn.Linear(hidden, 128))

    key = jax.random.PRNGKey(0)
    k_emb, k_ids, k_lm, k_w1, k_b1, k_w2, k_b2 = jax.random.split(key, 7)

    # TODO(synk): the LLaMA-2 + LoRA transformer backbone (tokenizer, peft,
    # AutoModelForCausalLM) has no clean Pallas equivalent; a deterministic
    # embedding lookup stands in for outputs.hidden_states[-1].
    emb_table = jax.random.normal(k_emb, (V, H), jnp.float32) * 0.1
    input_ids = jax.random.randint(k_ids, (B, S), 0, V)
    last_hidden = emb_table[input_ids]                    # (B, S, H), plain JAX glue

    # lm_head weight is stored in bf16 once (no per-call cast of a huge f32 W).
    w_lm = (jax.random.normal(k_lm, (H, V), jnp.float32) * 0.05).astype(jnp.bfloat16)
    w1 = jax.random.normal(k_w1, (H, VH), jnp.float32) * 0.05
    b1 = jax.random.normal(k_b1, (1, VH), jnp.float32) * 0.01
    w2 = jax.random.normal(k_w2, (VH, 1), jnp.float32) * 0.05
    b2 = jax.random.normal(k_b2, (1, 1), jnp.float32) * 0.01

    action_probs, value = actor_critic_forward(last_hidden, w_lm, w1, b1, w2, b2)
    action_probs, value = jax.block_until_ready((action_probs, value))

    # Reference (plain JAX), mirroring the kernel's bf16 lm-head operand casts.
    last_bf = last_hidden[:, -1, :].astype(jnp.bfloat16).astype(jnp.float32)
    ref_logits = last_bf @ w_lm.astype(jnp.float32)
    ref_probs = jax.nn.softmax(ref_logits, axis=-1)
    ref_pooled = last_hidden.mean(axis=1)
    ref_value = jnp.tanh(ref_pooled @ w1 + b1) @ w2 + b2

    assert action_probs.shape == (B, V) and value.shape == (B, 1)
    err_p = float(jnp.max(jnp.abs(action_probs - ref_probs)))
    err_v = float(jnp.max(jnp.abs(value - ref_value)))
    row_sum_err = float(jnp.max(jnp.abs(jnp.sum(action_probs, axis=-1) - 1.0)))
    assert err_p < 2e-3, err_p
    assert err_v < 1e-3, err_v
    assert row_sum_err < 1e-4, row_sum_err   # exact softmax divide

    print("KERNEL_OK")
</pallas_src>

<mosaic_0001>
module attributes {stable_mosaic.version = 11 : i64} {
  func.func @lm_head_kernel(%arg0: i32, %arg1: memref<8x256xbf16, #tpu.memory_space<vmem>>, %arg2: memref<256x512xbf16, #tpu.memory_space<vmem>>, %arg3: memref<8x512xf32, #tpu.memory_space<vmem>>) attributes {dimension_semantics = [#tpu.dimension_semantics<parallel>], iteration_bounds = array<i64: 2>, scalar_prefetch = 0 : i64, scratch_operands = 0 : i64, tpu.core_type = #tpu.core_type<tc>, window_params = [{pipeline_mode = #tpu.pipeline_mode<synchronous>, transform_indices = @transform_0, window_bounds = array<i64: 8, 256>}, {transform_indices = @transform_1, window_bounds = array<i64: 256, 512>}, {transform_indices = @transform_2, window_bounds = array<i64: 8, 512>}]} {
    %c0 = arith.constant 0 : index
    %c0_0 = arith.constant 0 : index
    %0 = vector.load %arg1[%c0, %c0_0] : memref<8x256xbf16, #tpu.memory_space<vmem>>, vector<8x256xbf16>
    %c0_1 = arith.constant 0 : index
    %c0_2 = arith.constant 0 : index
    %1 = vector.load %arg2[%c0_1, %c0_2] : memref<256x512xbf16, #tpu.memory_space<vmem>>, vector<256x512xbf16>
    %cst = arith.constant dense<0.000000e+00> : vector<8x512xf32>
    %2 = tpu.matmul %0, %1, %cst {dimension_numbers = #tpu.dot_dimension_numbers<[1], [0], [0], [1], [0, 0, 1, 1], [], []>} : vector<8x256xbf16>, vector<256x512xbf16>, vector<8x512xf32> -> vector<8x512xf32>
    %c0_3 = arith.constant 0 : index
    %c0_4 = arith.constant 0 : index
    %3 = vector.load %arg3[%c0_3, %c0_4] : memref<8x512xf32, #tpu.memory_space<vmem>>, vector<8x512xf32>
    tpu.vector_store %arg3[%c0_3, %c0_4], %2 {strides = array<i32>} : memref<8x512xf32, #tpu.memory_space<vmem>>, vector<8x512xf32>,
    return
  }
  func.func @transform_0(%arg0: i32) -> (i32, i32) {
    %c0_i32 = arith.constant 0 : i32
    %c0_i32_0 = arith.constant 0 : i32
    %c0_i32_1 = arith.constant 0 : i32
    return %c0_i32, %c0_i32_0 : i32, i32
  }
  func.func @transform_1(%arg0: i32) -> (i32, i32) {
    %c0_i32 = arith.constant 0 : i32
    %c0_i32_0 = arith.constant 0 : i32
    return %c0_i32, %arg0 : i32, i32
  }
  func.func @transform_2(%arg0: i32) -> (i32, i32) {
    %c0_i32 = arith.constant 0 : i32
    %c0_i32_0 = arith.constant 0 : i32
    return %c0_i32, %arg0 : i32, i32
  }
}

module attributes {stable_mosaic.version = 11 : i64} {
  func.func @softmax_kernel(%arg0: memref<8x1024xf32, #tpu.memory_space<vmem>>, %arg1: memref<8x1024xf32, #tpu.memory_space<vmem>>) attributes {dimension_semantics = [], scalar_prefetch = 0 : i64, scratch_operands = 0 : i64, tpu.core_type = #tpu.core_type<tc>} {
    %c0 = arith.constant 0 : index
    %c0_0 = arith.constant 0 : index
    %0 = vector.load %arg0[%c0, %c0_0] : memref<8x1024xf32, #tpu.memory_space<vmem>>, vector<8x1024xf32>
    %cst = arith.constant dense<0xFF800000> : vector<8xf32>
    %1 = vector.multi_reduction <maximumf>, %0, %cst [1] : vector<8x1024xf32> to vector<8xf32>
    %2 = vector.shape_cast %1 : vector<8xf32> to vector<8x1xf32>
    %3 = vector.broadcast %2 : vector<8x1xf32> to vector<8x1024xf32>
    %4 = arith.subf %0, %3 : vector<8x1024xf32>
    %5 = math.exp %4 : vector<8x1024xf32>
    %cst_1 = arith.constant dense<0.000000e+00> : vector<8xf32>
    %6 = vector.multi_reduction <add>, %5, %cst_1 [1] : vector<8x1024xf32> to vector<8xf32>
    %7 = vector.shape_cast %6 : vector<8xf32> to vector<8x1xf32>
    %8 = vector.broadcast %7 : vector<8x1xf32> to vector<8x1024xf32>
    %9 = arith.divf %5, %8 : vector<8x1024xf32>
    %c0_2 = arith.constant 0 : index
    %c0_3 = arith.constant 0 : index
    %10 = vector.load %arg1[%c0_2, %c0_3] : memref<8x1024xf32, #tpu.memory_space<vmem>>, vector<8x1024xf32>
    tpu.vector_store %arg1[%c0_2, %c0_3], %9 {strides = array<i32>} : memref<8x1024xf32, #tpu.memory_space<vmem>>, vector<8x1024xf32>,
    return
  }
}

module attributes {stable_mosaic.version = 11 : i64} {
  func.func @value_head_kernel(%arg0: i32, %arg1: memref<2x128x256xf32, #tpu.memory_space<vmem>>, %arg2: memref<256x128xf32, #tpu.memory_space<vmem>>, %arg3: memref<1x128xf32, #tpu.memory_space<vmem>>, %arg4: memref<1x128xf32, #tpu.memory_space<vmem>>, %arg5: memref<1x1xf32, #tpu.memory_space<vmem>>, %arg6: memref<2x1xf32, #tpu.memory_space<vmem>>, %arg7: memref<2x256xf32, #tpu.memory_space<vmem>>) attributes {dimension_semantics = [#tpu.dimension_semantics<arbitrary>], iteration_bounds = array<i64: 2>, scalar_prefetch = 0 : i64, scratch_operands = 1 : i64, tpu.core_type = #tpu.core_type<tc>, window_params = [{transform_indices = @transform_0, window_bounds = array<i64: 2, 128, 256>}, {pipeline_mode = #tpu.pipeline_mode<synchronous>, transform_indices = @transform_1, window_bounds = array<i64: 256, 128>}, {pipeline_mode = #tpu.pipeline_mode<synchronous>, transform_indices = @transform_2, window_bounds = array<i64: 1, 128>}, {pipeline_mode = #tpu.pipeline_mode<synchronous>, transform_indices = @transform_3, window_bounds = array<i64: 1, 128>}, {pipeline_mode = #tpu.pipeline_mode<synchronous>, transform_indices = @transform_4, window_bounds = array<i64: 1, 1>}, {pipeline_mode = #tpu.pipeline_mode<synchronous>, transform_indices = @transform_5, window_bounds = array<i64: 2, 1>}]} {
    %c0_i32 = arith.constant 0 : i32
    %0 = arith.cmpi eq, %arg0, %c0_i32 : i32
    %1 = arith.extui %0 : i1 to i32
    %c0_i32_0 = arith.constant 0 : i32
    %2 = arith.cmpi ne, %1, %c0_i32_0 : i32
    scf.if %2 {
      %cst_8 = arith.constant 0.000000e+00 : f32
      %11 = vector.broadcast %cst_8 : f32 to vector<2x256xf32>
      %c0_9 = arith.constant 0 : index
      %c0_10 = arith.constant 0 : index
      %12 = vector.load %arg7[%c0_9, %c0_10] : memref<2x256xf32, #tpu.memory_space<vmem>>, vector<2x256xf32>
      tpu.vector_store %arg7[%c0_9, %c0_10], %11 {strides = array<i32>} : memref<2x256xf32, #tpu.memory_space<vmem>>, vector<2x256xf32>,
    } else {
    }
    %c0 = arith.constant 0 : index
    %c0_1 = arith.constant 0 : index
    %3 = vector.load %arg7[%c0, %c0_1] : memref<2x256xf32, #tpu.memory_space<vmem>>, vector<2x256xf32>
    %c0_2 = arith.constant 0 : index
    %c0_3 = arith.constant 0 : index
    %c0_4 = arith.constant 0 : index
    %4 = vector.load %arg1[%c0_2, %c0_3, %c0_4] : memref<2x128x256xf32, #tpu.memory_space<vmem>>, vector<2x128x256xf32>
    %cst = arith.constant dense<0.000000e+00> : vector<2x256xf32>
    %5 = vector.multi_reduction <add>, %4, %cst [1] : vector<2x128x256xf32> to vector<2x256xf32>
    %6 = arith.addf %3, %5 : vector<2x256xf32>
    %c0_5 = arith.constant 0 : index
    %c0_6 = arith.constant 0 : index
    %7 = vector.load %arg7[%c0_5, %c0_6] : memref<2x256xf32, #tpu.memory_space<vmem>>, vector<2x256xf32>
    tpu.vector_store %arg7[%c0_5, %c0_6], %6 {strides = array<i32>} : memref<2x256xf32, #tpu.memory_space<vmem>>, vector<2x256xf32>,
    %c1_i32 = arith.constant 1 : i32
    %8 = arith.cmpi eq, %arg0, %c1_i32 : i32
    %9 = arith.extui %8 : i1 to i32
    %c0_i32_7 = arith.constant 0 : i32
    %10 = arith.cmpi ne, %9, %c0_i32_7 : i32
    scf.if %10 {
      %c0_8 = arith.constant 0 : index
      %c0_9 = arith.constant 0 : index
      %11 = vector.load %arg7[%c0_8, %c0_9] : memref<2x256xf32, #tpu.memory_space<vmem>>, vector<2x256xf32>
      %cst_10 = arith.constant 3.906250e-03 : f32
      %12 = vector.broadcast %cst_10 : f32 to vector<2x256xf32>
      %13 = arith.mulf %11, %12 : vector<2x256xf32>
      %c0_11 = arith.constant 0 : index
      %c0_12 = arith.constant 0 : index
      %14 = vector.load %arg2[%c0_11, %c0_12] : memref<256x128xf32, #tpu.memory_space<vmem>>, vector<256x128xf32>
      %cst_13 = arith.constant dense<0.000000e+00> : vector<2x128xf32>
      %15 = tpu.matmul %13, %14, %cst_13 {dimension_numbers = #tpu.dot_dimension_numbers<[1], [0], [0], [1], [0, 0, 1, 1], [], []>} : vector<2x256xf32>, vector<256x128xf32>, vector<2x128xf32> -> vector<2x128xf32>
      %c0_14 = arith.constant 0 : index
      %c0_15 = arith.constant 0 : index
      %16 = vector.load %arg3[%c0_14, %c0_15] : memref<1x128xf32, #tpu.memory_space<vmem>>, vector<1x128xf32>
      %17 = vector.broadcast %16 : vector<1x128xf32> to vector<2x128xf32>
      %18 = arith.addf %15, %17 : vector<2x128xf32>
      %19 = math.tanh %18 : vector<2x128xf32>
      %c0_16 = arith.constant 0 : index
      %c0_17 = arith.constant 0 : index
      %20 = vector.load %arg4[%c0_16, %c0_17] : memref<1x128xf32, #tpu.memory_space<vmem>>, vector<1x128xf32>
      %21 = vector.broadcast %20 : vector<1x128xf32> to vector<2x128xf32>
      %22 = arith.mulf %19, %21 : vector<2x128xf32>
      %cst_18 = arith.constant dense<0.000000e+00> : vector<2xf32>
      %23 = vector.multi_reduction <add>, %22, %cst_18 [1] : vector<2x128xf32> to vector<2xf32>
      %24 = vector.shape_cast %23 : vector<2xf32> to vector<2x1xf32>
      %c0_19 = arith.constant 0 : index
      %c0_20 = arith.constant 0 : index
      %25 = vector.load %arg5[%c0_19, %c0_20] : memref<1x1xf32, #tpu.memory_space<vmem>>, vector<1x1xf32>
      %26 = vector.broadcast %25 : vector<1x1xf32> to vector<2x1xf32>
      %27 = arith.addf %24, %26 : vector<2x1xf32>
      %c0_21 = arith.constant 0 : index
      %c0_22 = arith.constant 0 : index
      %28 = vector.load %arg6[%c0_21, %c0_22] : memref<2x1xf32, #tpu.memory_space<vmem>>, vector<2x1xf32>
      tpu.vector_store %arg6[%c0_21, %c0_22], %27 {strides = array<i32>} : memref<2x1xf32, #tpu.memory_space<vmem>>, vector<2x1xf32>,
    } else {
    }
    return
  }
  func.func @transform_0(%arg0: i32) -> (i32, i32, i32) {
    %c0_i32 = arith.constant 0 : i32
    %c0_i32_0 = arith.constant 0 : i32
    %c0_i32_1 = arith.constant 0 : i32
    return %c0_i32, %arg0, %c0_i32_0 : i32, i32, i32
  }
  func.func @transform_1(%arg0: i32) -> (i32, i32) {
    %c0_i32 = arith.constant 0 : i32
    %c0_i32_0 = arith.constant 0 : i32
    %c0_i32_1 = arith.constant 0 : i32
    return %c0_i32, %c0_i32_0 : i32, i32
  }
  func.func @transform_2(%arg0: i32) -> (i32, i32) {
    %c0_i32 = arith.constant 0 : i32
    %c0_i32_0 = arith.constant 0 : i32
    %c0_i32_1 = arith.constant 0 : i32
    return %c0_i32, %c0_i32_0 : i32, i32
  }
  func.func @transform_3(%arg0: i32) -> (i32, i32) {
    %c0_i32 = arith.constant 0 : i32
    %c0_i32_0 = arith.constant 0 : i32
    %c0_i32_1 = arith.constant 0 : i32
    return %c0_i32, %c0_i32_0 : i32, i32
  }
  func.func @transform_4(%arg0: i32) -> (i32, i32) {
    %c0_i32 = arith.constant 0 : i32
    %c0_i32_0 = arith.constant 0 : i32
    %c0_i32_1 = arith.constant 0 : i32
    return %c0_i32, %c0_i32_0 : i32, i32
  }
  func.func @transform_5(%arg0: i32) -> (i32, i32) {
    %c0_i32 = arith.constant 0 : i32
    %c0_i32_0 = arith.constant 0 : i32
    %c0_i32_1 = arith.constant 0 : i32
    return %c0_i32, %c0_i32_0 : i32, i32
  }
}

</mosaic_0001>

<llo_original>
// kernel: actor_critic_forward.4
$region0: #{actor_critic_forward.4}
  #allocation0 [shape = 'u32[]', space=smem, size = 0x4, offset = 0x4, fixed_abs, tag = 'smem constant byte address 0x4 - core index']
  #allocation1 [shape = 'u32[72,128]{1,0:T(1,128)}', space=vmem, size = 0x9000, scoped, tag = 'internal scratch']
  %s0 = inlined_call_operand.vmem [shape: f32[8,1024], index: 0, kind: input, shape index: {}]
  %s1 = inlined_call_operand.vmem [shape: f32[8,1024], index: 1, kind: output, shape index: {}]
  %s2 = sld [smem:[#allocation0]]
  $region14: #{actor_critic_forward.4} parent=0
    _
  %s4 = ssub.s32 1, %s2
  %s5 = scalar_select 0, %s4, %s2
  // Predicated region
  $region2: #{actor_critic_forward.4} parent=0 // pred_check
    _
  $region3: #{actor_critic_forward.4} parent=0 // pred_check_branch
    %7 = sbr.rel (0) target = $region5
  $region4: #{actor_critic_forward.4} parent=0 // pred_region
    _
  $region5: #{actor_critic_forward.4} parent=0 // pred_fallthru
    _
  %v8 = vld [vmem:[%s0] sm:$0xff]
  %v9 = vld [vmem:[%s0 + $0x8] sm:$0xff]
  %v10 = vld [vmem:[%s0 + $0x10] sm:$0xff]
  %v11 = vld [vmem:[%s0 + $0x18] sm:$0xff]
  %v12 = vld [vmem:[%s0 + $0x20] sm:$0xff]
  %v13 = vld [vmem:[%s0 + $0x28] sm:$0xff]
  %v14 = vld [vmem:[%s0 + $0x30] sm:$0xff]
  %v15 = vld [vmem:[%s0 + $0x38] sm:$0xff]
  %v16 = vmax.f32 %v8, %v12
  %v17 = vmax.f32 %v9, %v13
  %v18 = vmax.f32 %v10, %v14
  %v19 = vmax.f32 %v11, %v15
  %v20 = vmax.f32 %v16, %v17
  %v21 = vmax.f32 %v18, %v19
  %v22 = vmax.f32 %v20, %v21
  %23 = vmax.xlane.f32.xlu0 %v22
  %v24 = vpop.xlane.xlu0 %23
  %v25 = vsub.f32 %v8, %v24
  %v26 = vsub.f32 %v9, %v24
  %v27 = vsub.f32 %v10, %v24
  %v28 = vsub.f32 %v11, %v24
  %v29 = vsub.f32 %v12, %v24
  %v30 = vsub.f32 %v13, %v24
  %v31 = vsub.f32 %v14, %v24
  %v32 = vsub.f32 %v15, %v24
  %v33 = vmul.f32 %v25, 1.442695
  %v34 = vpow.pop %v33
  %v35 = vmul.f32 %v26, 1.442695
  %v36 = vpow.pop %v35
  %v37 = vmul.f32 %v27, 1.442695
  %v38 = vpow.pop %v37
  %v39 = vmul.f32 %v28, 1.442695
  %v40 = vpow.pop %v39
  %v41 = vmul.f32 %v29, 1.442695
  %v42 = vpow.pop %v41
  %v43 = vmul.f32 %v30, 1.442695
  %v44 = vpow.pop %v43
  %v45 = vmul.f32 %v31, 1.442695
  %v46 = vpow.pop %v45
  %v47 = vmul.f32 %v32, 1.442695
  %v48 = vpow.pop %v47
  %v49 = vadd.f32 %v34, %v36
  %v50 = vadd.f32 %v49, %v38
  %v51 = vadd.f32 %v50, %v40
  %v52 = vadd.f32 %v51, %v42
  %v53 = vadd.f32 %v52, %v44
  %v54 = vadd.f32 %v53, %v46
  %v55 = vadd.f32 %v54, %v48
  %56 = vadd.xlane.f32.xlu0 %v55
  %v57 = vpop.xlane.xlu0 %56
  %v58 = vrcp.pop %v57
  %v59 = vmul.f32 %v57, %v58
  %v60 = vsub.f32 1.0, %v59
  %v61 = vmul.f32 %v58, %v60
  %v62 = vadd.f32 %v58, %v61
  %vm63 = vweird.f32 %v57
  %vm64 = vweird.f32 %v58
  %vm65 = vmor %vm63, %vm64
  %v66 = vsel %vm65, %v58, %v62
  %v67 = vand.u32 2147483647, %v57
  %vm68 = vcmp.eq.f32.partialorder %v67, 8.507059e+37
  %v69 = vand.u32 %v57, 2147483648
  %v70 = vor.u32 1.1754944e-38, %v69
  %v71 = vsel %vm68, %v70, %v66
  %v72 = vmul.f32 %v34, %v71
  %v73 = vmul.f32 %v36, %v71
  %v74 = vmul.f32 %v38, %v71
  %v75 = vmul.f32 %v40, %v71
  %v76 = vmul.f32 %v42, %v71
  %v77 = vmul.f32 %v44, %v71
  %v78 = vmul.f32 %v46, %v71
  %v79 = vmul.f32 %v48, %v71
  %80 = vst [vmem:[%s1] sm:$0xff] %v72
  %81 = vst [vmem:[%s1 + $0x8] sm:$0xff] %v73
  %82 = vst [vmem:[%s1 + $0x10] sm:$0xff] %v74
  %83 = vst [vmem:[%s1 + $0x18] sm:$0xff] %v75
  %84 = vst [vmem:[%s1 + $0x20] sm:$0xff] %v76
  %85 = vst [vmem:[%s1 + $0x28] sm:$0xff] %v77
  %86 = vst [vmem:[%s1 + $0x30] sm:$0xff] %v78
  %87 = vst [vmem:[%s1 + $0x38] sm:$0xff] %v79
  // Predicated region
  $region6: #{actor_critic_forward.4} parent=0 // pred_check
    _
  $region7: #{actor_critic_forward.4} parent=0 // pred_check_branch
    %89 = sbr.rel (0) target = $region9
  $region8: #{actor_critic_forward.4} parent=0 // pred_region
    _
  $region9: #{actor_critic_forward.4} parent=0 // pred_fallthru
    _
  // Predicated region
  $region10: #{actor_critic_forward.4} parent=0 // pred_check
    _
  $region11: #{actor_critic_forward.4} parent=0 // pred_check_branch
    %91 = sbr.rel (0) target = $region13
  $region12: #{actor_critic_forward.4} parent=0 // pred_region
    _
  $region13: #{actor_critic_forward.4} parent=0 // pred_fallthru
    _

// kernel: actor_critic_forward.3
$region0: #{actor_critic_forward.3}
  #allocation0 [shape = 'u32[]', space=smem, size = 0x4, offset = 0x4, fixed_abs, tag = 'smem constant byte address 0x4 - core index']
  #allocation1 [shape = 'u32[72,128]{1,0:T(1,128)}', space=vmem, size = 0x9000, scoped, tag = 'internal scratch']
  %s0 = inlined_call_operand.vmem [shape: bf16[8,256], index: 0, kind: input, shape index: {}]
  %s1 = inlined_call_operand.hbm [shape: bf16[256,1024], index: 1, kind: input, shape index: {}]
  %s2 = inlined_call_operand.vmem [shape: f32[8,1024], index: 2, kind: output, shape index: {}]
  %s3 = sld [smem:[#allocation0]]
  $region45: #{actor_critic_forward.3} parent=0
    _
  %s5 = ssub.s32 1, %s3
  %s6 = scalar_select 0, %s5, %s3
  $region1: #{actor_critic_forward.3} parent=0
    #allocation2 [shape = 'u8[524288]{0}', space=vmem, size = 0x80000, scoped, tag = 'input window, operand 1']
    #allocation3 [shape = 's32[2]{0}', space=sflag, size = 0x8, scoped, tag = 'scoped memory for actor_critic_forward.3']
    %7 = vsyncpa [#allocation3], 0
    %s8 = scalar_lea.sflag [#allocation3], 1
    %9 = vsyncpa %s8, 0
    loop: start=0, step=1, limit=4
    $region2: #{actor_critic_forward.3} parent=1 // loop_pre_header
      _
    $region3: #{actor_critic_forward.3} parent=1 // loop_header
      %s11 = sphi 0, %s15
      %p12 = scmp.ge.s32.totalorder %s11, 4
      %s19 = sphi 0, %s19
      %s21 = sphi 0, %s19
      %s22 = sphi 0, %s21
      %s36 = sphi 0, %s22
      %s42 = sphi 0, %s44
      %s45 = sphi 0, %s42
      %s46 = sphi 0, %s45
      %s62 = sphi 0, %s46
      %s68 = sphi 0, %s70
      %s71 = sphi 0, %s68
      %s72 = sphi 0, %s71
      %s88 = sphi 0, %s72
    $region4: #{actor_critic_forward.3} parent=1 // loop_header_branch
      %14 = sbr.rel (%p12) target = $region8
    $region5: #{actor_critic_forward.3} parent=1 // loop_body
      %s16 = ssub.s32 %s11, 1
      %s17 = ssub.s32 %s11, 2
      %s18 = sadd.s32 %s11, 1
      %s20 = sadd.s32 %s19, 1
      %p23 = scmp.eq.s32.totalorder %s11, 1
      %p24 = scmp.ne.s32.totalorder %s19, %s21
      %p25 = scmp.eq.s32.totalorder %s11, 0
      %p26 = por %p24, %p25
      %p27 = scmp.ne.s32.totalorder %s19, %s21
      %p28 = scmp.eq.s32.totalorder %s16, 1
      %p29 = por %p27, %p28
      %p30 = scmp.ne.s32.totalorder %s21, %s22
      %p31 = scmp.eq.s32.totalorder %s16, 0
      %p32 = por %p30, %p31
      %p33 = scmp.ne.s32.totalorder %s21, %s22
      %p34 = scmp.eq.s32.totalorder %s17, 1
      %p35 = por %p33, %p34
      %p37 = scmp.ne.s32.totalorder %s22, %s36
      %p38 = scmp.eq.s32.totalorder %s17, 0
      %p39 = por %p37, %p38
      %s40 = ssub.s32 %s11, %s18
      %p41 = scmp.eq.s32.totalorder %s40, 0
      %s43 = sadd.s32 %s42, 1
      %s44 = scalar_select %p41, %s42, %s43
      %p47 = pneg %p41
      %p48 = scmp.eq.s32.totalorder %s11, 1
      %p49 = por %p47, %p48
      %p50 = scmp.ne.s32.totalorder %s42, %s45
      %p51 = scmp.eq.s32.totalorder %s11, 0
      %p52 = por %p50, %p51
      %p53 = scmp.ne.s32.totalorder %s42, %s45
      %p54 = scmp.eq.s32.totalorder %s16, 1
      %p55 = por %p53, %p54
      %p56 = scmp.ne.s32.totalorder %s45, %s46
      %p57 = scmp.eq.s32.totalorder %s16, 0
      %p58 = por %p56, %p57
      %p59 = scmp.ne.s32.totalorder %s45, %s46
      %p60 = scmp.eq.s32.totalorder %s17, 1
      %p61 = por %p59, %p60
      %p63 = scmp.ne.s32.totalorder %s46, %s62
      %p64 = scmp.eq.s32.totalorder %s17, 0
      %p65 = por %p63, %p64
      %s66 = ssub.s32 %s11, %s18
      %p67 = scmp.eq.s32.totalorder %s66, 0
      %s69 = sadd.s32 %s68, 1
      %s70 = scalar_select %p67, %s68, %s69
      %p73 = pneg %p67
      %p74 = scmp.eq.s32.totalorder %s11, 1
      %p75 = por %p73, %p74
      %p76 = scmp.ne.s32.totalorder %s68, %s71
      %p77 = scmp.eq.s32.totalorder %s11, 0
      %p78 = por %p76, %p77
      %p79 = scmp.ne.s32.totalorder %s68, %s71
      %p80 = scmp.eq.s32.totalorder %s16, 1
      %p81 = por %p79, %p80
      %p82 = scmp.ne.s32.totalorder %s71, %s72
      %p83 = scmp.eq.s32.totalorder %s16, 0
      %p84 = por %p82, %p83
      %p85 = scmp.ne.s32.totalorder %s71, %s72
      %p86 = scmp.eq.s32.totalorder %s17, 1
      %p87 = por %p85, %p86
      %p89 = scmp.ne.s32.totalorder %s72, %s88
      %p90 = scmp.eq.s32.totalorder %s17, 0
      %p91 = por %p89, %p90
      %p92 = scmp.le.s32.totalorder 1, %s11
      %p93 = scmp.lt.s32.totalorder %s11, 3
      %p94 = pnand %p92, %p93
      %p95 = pneg %p94
      // Predicated region
      $region9: #{actor_critic_forward.3} parent=5 // pred_check
        _
      $region10: #{actor_critic_forward.3} parent=5 // pred_check_branch
        %97 = sbr.rel (%p94) target = $region12
      $region11: #{actor_critic_forward.3} parent=5 // pred_region
        %s98 = ssub.s32 %s11, 1
        // Predicated region
        $region13: #{actor_critic_forward.3} parent=11 // pred_check
          %p99 = pneg %p32
        $region14: #{actor_critic_forward.3} parent=11 // pred_check_branch
          %101 = sbr.rel (%p99) target = $region16
        $region15: #{actor_critic_forward.3} parent=11 // pred_region
          _
        $region16: #{actor_critic_forward.3} parent=11 // pred_fallthru
          _
      $region12: #{actor_critic_forward.3} parent=5 // pred_fallthru
        _
      %p102 = scmp.lt.s32.totalorder %s11, 2
      // Predicated region
      $region17: #{actor_critic_forward.3} parent=5 // pred_check
        %p103 = pneg %p102
      $region18: #{actor_critic_forward.3} parent=5 // pred_check_branch
        %105 = sbr.rel (%p103) target = $region20
      $region19: #{actor_critic_forward.3} parent=5 // pred_region
        // Predicated region
        $region21: #{actor_critic_forward.3} parent=19 // pred_check
          %p106 = pneg %p52
        $region22: #{actor_critic_forward.3} parent=19 // pred_check_branch
          %108 = sbr.rel (%p106) target = $region24
        $region23: #{actor_critic_forward.3} parent=19 // pred_region
          %s109 = sand.u32 %s42, 1
          %s110 = scalar_lea.sflag [#allocation3], %s109
          %s111 = sand.u32 %s42, 1
          %s112 = smul.addr %s111, 512
          %s113 = scalar_lea.vmem [#allocation2], %s112
          %s114 = smul.u32 4, %s11
          %116 = vsyncadd %s110, 0
          %s117 = smul.addr %s114, 4
          %s118 = scalar_lea.hbm %s1, %s117
          %s119 = sshll.u32 %s118, 4
          %s120 = int_to_ptr.hbm [resolvable:$true] %s119
          %s121 = sshll.u32 %s113, 4
          %s122 = int_to_ptr.vmem [resolvable:$true] %s121
          %127 = dma.hbm_to_vmem [thread:$0]  %s120, 8192, %s122, %s110, 512, 256, 16
        $region24: #{actor_critic_forward.3} parent=19 // pred_fallthru
          _
      $region20: #{actor_critic_forward.3} parent=5 // pred_fallthru
        _
      %p128 = scmp.le.s32.totalorder 1, %s11
      %p129 = scmp.lt.s32.totalorder %s11, 3
      %p130 = pnand %p128, %p129
      %p131 = pneg %p130
      // Predicated region
      $region25: #{actor_critic_forward.3} parent=5 // pred_check
        _
      $region26: #{actor_critic_forward.3} parent=5 // pred_check_branch
        %133 = sbr.rel (%p130) target = $region28
      $region27: #{actor_critic_forward.3} parent=5 // pred_region
        %s134 = ssub.s32 %s11, 1
        %s135 = sand.u32 %s45, 1
        %s136 = scalar_lea.sflag [#allocation3], %s135
        %s137 = sand.u32 %s45, 1
        %s138 = smul.addr %s137, 512
        %s139 = scalar_lea.vmem [#allocation2], %s138
        // Predicated region
        $region29: #{actor_critic_forward.3} parent=27 // pred_check
          %p140 = pneg %p58
        $region30: #{actor_critic_forward.3} parent=27 // pred_check_branch
          %142 = sbr.rel (%p140) target = $region32
        $region31: #{actor_critic_forward.3} parent=27 // pred_region
          %144 = dma.done %s136, 8192
        $region32: #{actor_critic_forward.3} parent=27 // pred_fallthru
          _
        %p145 = pneg %p32
        %p146 = pneg %p29
        %s147 = sand.u32 %s45, 1
        %s148 = scalar_lea.sflag [#allocation3], %s147
        %s149 = sand.u32 %s45, 1
        %s150 = smul.addr %s149, 512
        %s151 = scalar_lea.vmem [#allocation2], %s150
        %p152 = pneg %p58
        %p153 = pneg %p55
        %p154 = pneg %p84
        %p155 = pneg %p81
        %s156 = smul.u32 4, %s16
        %p157 = scmp.lt.s32.totalorder %s156, 7
        %s158 = scalar_select %p157, %s156, 7
        %s159 = smul.addr %s158, 8
        %s160 = scalar_lea.vmem %s2, %s159
        %s161 = smul.u32 4, %s16
        %s162 = smul.u32 4, %s16
        %p163 = scmp.lt.s32.totalorder %s162, 7
        %s164 = scalar_select %p163, %s162, 7
        %s165 = smul.addr %s164, 8
        %s166 = scalar_lea.vmem %s2, %s165
        %s167 = smul.u32 4, %s16
        %v168 = vld [vmem:[%s0] sm:$0xff]
        %v169 = vld [vmem:[%s139] sm:$0xff]
        %v170 = vld [vmem:[%s139 + $0x8] sm:$0xff]
        %v171 = vld [vmem:[%s139 + $0x10] sm:$0xff]
        %v172 = vld [vmem:[%s139 + $0x18] sm:$0xff]
        %v173 = vld [vmem:[%s139 + $0x20] sm:$0xff]
        %v174 = vld [vmem:[%s139 + $0x28] sm:$0xff]
        %v175 = vld [vmem:[%s139 + $0x30] sm:$0xff]
        %v176 = vld [vmem:[%s139 + $0x38] sm:$0xff]
        %v177 = vld [vmem:[%s139 + $0x40] sm:$0xff]
        %v178 = vld [vmem:[%s139 + $0x48] sm:$0xff]
        %v179 = vld [vmem:[%s139 + $0x50] sm:$0xff]
        %v180 = vld [vmem:[%s139 + $0x58] sm:$0xff]
        %v181 = vld [vmem:[%s139 + $0x60] sm:$0xff]
        %v182 = vld [vmem:[%s139 + $0x68] sm:$0xff]
        %v183 = vld [vmem:[%s139 + $0x70] sm:$0xff]
        %v184 = vld [vmem:[%s139 + $0x78] sm:$0xff]
        %v185 = vld [vmem:[%s139 + $0x80] sm:$0xff]
        %v186 = vld [vmem:[%s139 + $0x88] sm:$0xff]
        %v187 = vld [vmem:[%s139 + $0x90] sm:$0xff]
        %v188 = vld [vmem:[%s139 + $0x98] sm:$0xff]
        %v189 = vld [vmem:[%s139 + $0xa0] sm:$0xff]
        %v190 = vld [vmem:[%s139 + $0xa8] sm:$0xff]
        %v191 = vld [vmem:[%s139 + $0xb0] sm:$0xff]
        %v192 = vld [vmem:[%s139 + $0xb8] sm:$0xff]
        %v193 = vld [vmem:[%s139 + $0xc0] sm:$0xff]
        %v194 = vld [vmem:[%s139 + $0xc8] sm:$0xff]
        %v195 = vld [vmem:[%s139 + $0xd0] sm:$0xff]
        %v196 = vld [vmem:[%s139 + $0xd8] sm:$0xff]
        %v197 = vld [vmem:[%s139 + $0xe0] sm:$0xff]
        %v198 = vld [vmem:[%s139 + $0xe8] sm:$0xff]
        %v199 = vld [vmem:[%s139 + $0xf0] sm:$0xff]
        %v200 = vld [vmem:[%s139 + $0xf8] sm:$0xff]
        %v201 = vld [vmem:[%s139 + $0x100] sm:$0xff]
        %v202 = vld [vmem:[%s139 + $0x108] sm:$0xff]
        %v203 = vld [vmem:[%s139 + $0x110] sm:$0xff]
        %v204 = vld [vmem:[%s139 + $0x118] sm:$0xff]
        %v205 = vld [vmem:[%s139 + $0x120] sm:$0xff]
        %v206 = vld [vmem:[%s139 + $0x128] sm:$0xff]
        %v207 = vld [vmem:[%s139 + $0x130] sm:$0xff]
        %v208 = vld [vmem:[%s139 + $0x138] sm:$0xff]
        %v209 = vld [vmem:[%s139 + $0x140] sm:$0xff]
        %v210 = vld [vmem:[%s139 + $0x148] sm:$0xff]
        %v211 = vld [vmem:[%s139 + $0x150] sm:$0xff]
        %v212 = vld [vmem:[%s139 + $0x158] sm:$0xff]
        %v213 = vld [vmem:[%s139 + $0x160] sm:$0xff]
        %v214 = vld [vmem:[%s139 + $0x168] sm:$0xff]
        %v215 = vld [vmem:[%s139 + $0x170] sm:$0xff]
        %v216 = vld [vmem:[%s139 + $0x178] sm:$0xff]
        %v217 = vld [vmem:[%s139 + $0x180] sm:$0xff]
        %v218 = vld [vmem:[%s139 + $0x188] sm:$0xff]
        %v219 = vld [vmem:[%s139 + $0x190] sm:$0xff]
        %v220 = vld [vmem:[%s139 + $0x198] sm:$0xff]
        %v221 = vld [vmem:[%s139 + $0x1a0] sm:$0xff]
        %v222 = vld [vmem:[%s139 + $0x1a8] sm:$0xff]
        %v223 = vld [vmem:[%s139 + $0x1b0] sm:$0xff]
        %v224 = vld [vmem:[%s139 + $0x1b8] sm:$0xff]
        %v225 = vld [vmem:[%s139 + $0x1c0] sm:$0xff]
        %v226 = vld [vmem:[%s139 + $0x1c8] sm:$0xff]
        %v227 = vld [vmem:[%s139 + $0x1d0] sm:$0xff]
        %v228 = vld [vmem:[%s139 + $0x1d8] sm:$0xff]
        %v229 = vld [vmem:[%s139 + $0x1e0] sm:$0xff]
        %v230 = vld [vmem:[%s139 + $0x1e8] sm:$0xff]
        %v231 = vld [vmem:[%s139 + $0x1f0] sm:$0xff]
        %v232 = vld [vmem:[%s139 + $0x1f8] sm:$0xff]
        %v234 = vunpack.c.l.b16 %v168
        %v235 = vunpack.c.h.b16 %v168
        %v236 = vpack.c.b16 %v234, %v234
        %v237 = vpack.c.b16 %v235, %v235
        %v304 = vunpack.c.l.b16 %v169
        %v305 = vunpack.c.h.b16 %v169
        %v306 = vunpack.c.l.b16 %v170
        %v307 = vunpack.c.h.b16 %v170
        %v308 = vunpack.c.l.b16 %v171
        %v309 = vunpack.c.h.b16 %v171
        %v310 = vunpack.c.l.b16 %v172
        %v311 = vunpack.c.h.b16 %v172
        %v312 = vunpack.c.l.b16 %v173
        %v313 = vunpack.c.h.b16 %v173
        %v314 = vunpack.c.l.b16 %v174
        %v315 = vunpack.c.h.b16 %v174
        %v316 = vunpack.c.l.b16 %v175
        %v317 = vunpack.c.h.b16 %v175
        %v318 = vunpack.c.l.b16 %v176
        %v319 = vunpack.c.h.b16 %v176
        %v320 = vunpack.c.l.b16 %v177
        %v321 = vunpack.c.h.b16 %v177
        %v322 = vunpack.c.l.b16 %v178
        %v323 = vunpack.c.h.b16 %v178
        %v324 = vunpack.c.l.b16 %v179
        %v325 = vunpack.c.h.b16 %v179
        %v326 = vunpack.c.l.b16 %v180
        %v327 = vunpack.c.h.b16 %v180
        %v328 = vunpack.c.l.b16 %v181
        %v329 = vunpack.c.h.b16 %v181
        %v330 = vunpack.c.l.b16 %v182
        %v331 = vunpack.c.h.b16 %v182
        %v332 = vunpack.c.l.b16 %v183
        %v333 = vunpack.c.h.b16 %v183
        %v334 = vunpack.c.l.b16 %v184
        %v335 = vunpack.c.h.b16 %v184
        %v336 = vunpack.c.l.b16 %v185
        %v337 = vunpack.c.h.b16 %v185
        %v338 = vunpack.c.l.b16 %v186
        %v339 = vunpack.c.h.b16 %v186
        %v340 = vunpack.c.l.b16 %v187
        %v341 = vunpack.c.h.b16 %v187
        %v342 = vunpack.c.l.b16 %v188
        %v343 = vunpack.c.h.b16 %v188
        %v344 = vunpack.c.l.b16 %v189
        %v345 = vunpack.c.h.b16 %v189
        %v346 = vunpack.c.l.b16 %v190
        %v347 = vunpack.c.h.b16 %v190
        %v348 = vunpack.c.l.b16 %v191
        %v349 = vunpack.c.h.b16 %v191
        %v350 = vunpack.c.l.b16 %v192
        %v351 = vunpack.c.h.b16 %v192
        %v352 = vunpack.c.l.b16 %v193
        %v353 = vunpack.c.h.b16 %v193
        %v354 = vunpack.c.l.b16 %v194
        %v355 = vunpack.c.h.b16 %v194
        %v356 = vunpack.c.l.b16 %v195
        %v357 = vunpack.c.h.b16 %v195
        %v358 = vunpack.c.l.b16 %v196
        %v359 = vunpack.c.h.b16 %v196
        %v360 = vunpack.c.l.b16 %v197
        %v361 = vunpack.c.h.b16 %v197
        %v362 = vunpack.c.l.b16 %v198
        %v363 = vunpack.c.h.b16 %v198
        %v364 = vunpack.c.l.b16 %v199
        %v365 = vunpack.c.h.b16 %v199
        %v366 = vunpack.c.l.b16 %v200
        %v367 = vunpack.c.h.b16 %v200
        %v368 = vunpack.c.l.b16 %v201
        %v369 = vunpack.c.h.b16 %v201
        %v370 = vunpack.c.l.b16 %v202
        %v371 = vunpack.c.h.b16 %v202
        %v372 = vunpack.c.l.b16 %v203
        %v373 = vunpack.c.h.b16 %v203
        %v374 = vunpack.c.l.b16 %v204
        %v375 = vunpack.c.h.b16 %v204
        %v376 = vunpack.c.l.b16 %v205
        %v377 = vunpack.c.h.b16 %v205
        %v378 = vunpack.c.l.b16 %v206
        %v379 = vunpack.c.h.b16 %v206
        %v380 = vunpack.c.l.b16 %v207
        %v381 = vunpack.c.h.b16 %v207
        %v382 = vunpack.c.l.b16 %v208
        %v383 = vunpack.c.h.b16 %v208
        %v384 = vunpack.c.l.b16 %v209
        %v385 = vunpack.c.h.b16 %v209
        %v386 = vunpack.c.l.b16 %v210
        %v387 = vunpack.c.h.b16 %v210
        %v388 = vunpack.c.l.b16 %v211
        %v389 = vunpack.c.h.b16 %v211
        %v390 = vunpack.c.l.b16 %v212
        %v391 = vunpack.c.h.b16 %v212
        %v392 = vunpack.c.l.b16 %v213
        %v393 = vunpack.c.h.b16 %v213
        %v394 = vunpack.c.l.b16 %v214
        %v395 = vunpack.c.h.b16 %v214
        %v396 = vunpack.c.l.b16 %v215
        %v397 = vunpack.c.h.b16 %v215
        %v398 = vunpack.c.l.b16 %v216
        %v399 = vunpack.c.h.b16 %v216
        %v400 = vunpack.c.l.b16 %v217
        %v401 = vunpack.c.h.b16 %v217
        %v402 = vunpack.c.l.b16 %v218
        %v403 = vunpack.c.h.b16 %v218
        %v404 = vunpack.c.l.b16 %v219
        %v405 = vunpack.c.h.b16 %v219
        %v406 = vunpack.c.l.b16 %v220
        %v407 = vunpack.c.h.b16 %v220
        %v408 = vunpack.c.l.b16 %v221
        %v409 = vunpack.c.h.b16 %v221
        %v410 = vunpack.c.l.b16 %v222
        %v411 = vunpack.c.h.b16 %v222
        %v412 = vunpack.c.l.b16 %v223
        %v413 = vunpack.c.h.b16 %v223
        %v414 = vunpack.c.l.b16 %v224
        %v415 = vunpack.c.h.b16 %v224
        %v416 = vunpack.c.l.b16 %v225
        %v417 = vunpack.c.h.b16 %v225
        %v418 = vunpack.c.l.b16 %v226
        %v419 = vunpack.c.h.b16 %v226
        %v420 = vunpack.c.l.b16 %v227
        %v421 = vunpack.c.h.b16 %v227
        %v422 = vunpack.c.l.b16 %v228
        %v423 = vunpack.c.h.b16 %v228
        %v424 = vunpack.c.l.b16 %v229
        %v425 = vunpack.c.h.b16 %v229
        %v426 = vunpack.c.l.b16 %v230
        %v427 = vunpack.c.h.b16 %v230
        %v428 = vunpack.c.l.b16 %v231
        %v429 = vunpack.c.h.b16 %v231
        %v430 = vunpack.c.l.b16 %v232
        %v431 = vunpack.c.h.b16 %v232
        %v432 = vpack.c.b16 %v308, %v304
        %v433 = vpack.c.b16 %v309, %v305
        %v434 = vpack.c.b16 %v310, %v306
        %v435 = vpack.c.b16 %v311, %v307
        %v436 = vpack.c.b16 %v316, %v312
        %v437 = vpack.c.b16 %v317, %v313
        %v438 = vpack.c.b16 %v318, %v314
        %v439 = vpack.c.b16 %v319, %v315
        %v440 = vpack.c.b16 %v324, %v320
        %v441 = vpack.c.b16 %v325, %v321
        %v442 = vpack.c.b16 %v326, %v322
        %v443 = vpack.c.b16 %v327, %v323
        %v444 = vpack.c.b16 %v332, %v328
        %v445 = vpack.c.b16 %v333, %v329
        %v446 = vpack.c.b16 %v334, %v330
        %v447 = vpack.c.b16 %v335, %v331
        %v448 = vpack.c.b16 %v340, %v336
        %v449 = vpack.c.b16 %v341, %v337
        %v450 = vpack.c.b16 %v342, %v338
        %v451 = vpack.c.b16 %v343, %v339
        %v452 = vpack.c.b16 %v348, %v344
        %v453 = vpack.c.b16 %v349, %v345
        %v454 = vpack.c.b16 %v350, %v346
        %v455 = vpack.c.b16 %v351, %v347
        %v456 = vpack.c.b16 %v356, %v352
        %v457 = vpack.c.b16 %v357, %v353
        %v458 = vpack.c.b16 %v358, %v354
        %v459 = vpack.c.b16 %v359, %v355
        %v460 = vpack.c.b16 %v364, %v360
        %v461 = vpack.c.b16 %v365, %v361
        %v462 = vpack.c.b16 %v366, %v362
        %v463 = vpack.c.b16 %v367, %v363
        %v464 = vpack.c.b16 %v372, %v368
        %v465 = vpack.c.b16 %v373, %v369
        %v466 = vpack.c.b16 %v374, %v370
        %v467 = vpack.c.b16 %v375, %v371
        %v468 = vpack.c.b16 %v380, %v376
        %v469 = vpack.c.b16 %v381, %v377
        %v470 = vpack.c.b16 %v382, %v378
        %v471 = vpack.c.b16 %v383, %v379
        %v472 = vpack.c.b16 %v388, %v384
        %v473 = vpack.c.b16 %v389, %v385
        %v474 = vpack.c.b16 %v390, %v386
        %v475 = vpack.c.b16 %v391, %v387
        %v476 = vpack.c.b16 %v396, %v392
        %v477 = vpack.c.b16 %v397, %v393
        %v478 = vpack.c.b16 %v398, %v394
        %v479 = vpack.c.b16 %v399, %v395
        %v480 = vpack.c.b16 %v404, %v400
        %v481 = vpack.c.b16 %v405, %v401
        %v482 = vpack.c.b16 %v406, %v402
        %v483 = vpack.c.b16 %v407, %v403
        %v484 = vpack.c.b16 %v412, %v408
        %v485 = vpack.c.b16 %v413, %v409
        %v486 = vpack.c.b16 %v414, %v410
        %v487 = vpack.c.b16 %v415, %v411
        %v488 = vpack.c.b16 %v420, %v416
        %v489 = vpack.c.b16 %v421, %v417
        %v490 = vpack.c.b16 %v422, %v418
        %v491 = vpack.c.b16 %v423, %v419
        %v492 = vpack.c.b16 %v428, %v424
        %v493 = vpack.c.b16 %v429, %v425
        %v494 = vpack.c.b16 %v430, %v426
        %v495 = vpack.c.b16 %v431, %v427
        %560 = vmatpush.bf16.msra.mxu0 %v460
        %561 = vmatpush.bf16.msra.mxu0 %v456
        %562 = vmatpush.bf16.msra.mxu0 %v452
        %563 = vmatpush.bf16.msra.mxu0 %v448
        %564 = vmatpush.bf16.msra.mxu0 %v444
        %565 = vmatpush.bf16.msra.mxu0 %v440
        %566 = vmatpush.bf16.msra.mxu0 %v436
        %567 = vmatpush.bf16.msra.mxu0 %v432
        %568 = vmatmul.bf16.gmra.mxu0 %v236
        %v569 = vpop.f32.mrf.mxu0
        %v570 = vadd.f32 0.0, %v569
        %v571 = vpop.f32.mrf.mxu0
        %572 = vdwg.mxu0
        %573 = vmatpush.bf16.msra.mxu0 %v492
        %574 = vmatpush.bf16.msra.mxu0 %v488
        %575 = vmatpush.bf16.msra.mxu0 %v484
        %576 = vmatpush.bf16.msra.mxu0 %v480
        %577 = vmatpush.bf16.msra.mxu0 %v476
        %578 = vmatpush.bf16.msra.mxu0 %v472
        %579 = vmatpush.bf16.msra.mxu0 %v468
        %580 = vmatpush.bf16.msra.mxu0 %v464
        %581 = vmatmul.bf16.gmra.mxu0 %v237
        %v582 = vpop.f32.mrf.mxu0
        %v583 = vadd.f32 %v570, %v582
        %v584 = vpop.f32.mrf.mxu0
        %585 = vdwg.mxu0
        %586 = vmatpush.bf16.msra.mxu0 %v461
        %587 = vmatpush.bf16.msra.mxu0 %v457
        %588 = vmatpush.bf16.msra.mxu0 %v453
        %589 = vmatpush.bf16.msra.mxu0 %v449
        %590 = vmatpush.bf16.msra.mxu0 %v445
        %591 = vmatpush.bf16.msra.mxu0 %v441
        %592 = vmatpush.bf16.msra.mxu0 %v437
        %593 = vmatpush.bf16.msra.mxu0 %v433
        %594 = vmatmul.bf16.gmra.mxu0 %v236
        %v595 = vpop.f32.mrf.mxu0
        %v596 = vadd.f32 0.0, %v595
        %v597 = vpop.f32.mrf.mxu0
        %598 = vdwg.mxu0
        %599 = vmatpush.bf16.msra.mxu0 %v493
        %600 = vmatpush.bf16.msra.mxu0 %v489
        %601 = vmatpush.bf16.msra.mxu0 %v485
        %602 = vmatpush.bf16.msra.mxu0 %v481
        %603 = vmatpush.bf16.msra.mxu0 %v477
        %604 = vmatpush.bf16.msra.mxu0 %v473
        %605 = vmatpush.bf16.msra.mxu0 %v469
        %606 = vmatpush.bf16.msra.mxu0 %v465
        %607 = vmatmul.bf16.gmra.mxu0 %v237
        %v608 = vpop.f32.mrf.mxu0
        %v609 = vadd.f32 %v596, %v608
        %v610 = vpop.f32.mrf.mxu0
        %611 = vdwg.mxu0
        %612 = vmatpush.bf16.msra.mxu0 %v462
        %613 = vmatpush.bf16.msra.mxu0 %v458
        %614 = vmatpush.bf16.msra.mxu0 %v454
        %615 = vmatpush.bf16.msra.mxu0 %v450
        %616 = vmatpush.bf16.msra.mxu0 %v446
        %617 = vmatpush.bf16.msra.mxu0 %v442
        %618 = vmatpush.bf16.msra.mxu0 %v438
        %619 = vmatpush.bf16.msra.mxu0 %v434
        %620 = vmatmul.bf16.gmra.mxu0 %v236
        %v621 = vpop.f32.mrf.mxu0
        %v622 = vadd.f32 0.0, %v621
        %v623 = vpop.f32.mrf.mxu0
        %624 = vdwg.mxu0
        %625 = vmatpush.bf16.msra.mxu0 %v494
        %626 = vmatpush.bf16.msra.mxu0 %v490
        %627 = vmatpush.bf16.msra.mxu0 %v486
        %628 = vmatpush.bf16.msra.mxu0 %v482
        %629 = vmatpush.bf16.msra.mxu0 %v478
        %630 = vmatpush.bf16.msra.mxu0 %v474
        %631 = vmatpush.bf16.msra.mxu0 %v470
        %632 = vmatpush.bf16.msra.mxu0 %v466
        %633 = vmatmul.bf16.gmra.mxu0 %v237
        %v634 = vpop.f32.mrf.mxu0
        %v635 = vadd.f32 %v622, %v634
        %v636 = vpop.f32.mrf.mxu0
        %637 = vdwg.mxu0
        %638 = vmatpush.bf16.msra.mxu0 %v463
        %639 = vmatpush.bf16.msra.mxu0 %v459
        %640 = vmatpush.bf16.msra.mxu0 %v455
        %641 = vmatpush.bf16.msra.mxu0 %v451
        %642 = vmatpush.bf16.msra.mxu0 %v447
        %643 = vmatpush.bf16.msra.mxu0 %v443
        %644 = vmatpush.bf16.msra.mxu0 %v439
        %645 = vmatpush.bf16.msra.mxu0 %v435
        %646 = vmatmul.bf16.gmra.mxu0 %v236
        %v647 = vpop.f32.mrf.mxu0
        %v648 = vadd.f32 0.0, %v647
        %v649 = vpop.f32.mrf.mxu0
        %650 = vdwg.mxu0
        %651 = vmatpush.bf16.msra.mxu0 %v495
        %652 = vmatpush.bf16.msra.mxu0 %v491
        %653 = vmatpush.bf16.msra.mxu0 %v487
        %654 = vmatpush.bf16.msra.mxu0 %v483
        %655 = vmatpush.bf16.msra.mxu0 %v479
        %656 = vmatpush.bf16.msra.mxu0 %v475
        %657 = vmatpush.bf16.msra.mxu0 %v471
        %658 = vmatpush.bf16.msra.mxu0 %v467
        %659 = vmatmul.bf16.gmra.mxu0 %v237
        %v660 = vpop.f32.mrf.mxu0
        %v661 = vadd.f32 %v648, %v660
        %v662 = vpop.f32.mrf.mxu0
        %663 = vdwg.mxu0
        %664 = vst [vmem:[%s166] sm:$0xff] %v583
        %665 = vst [vmem:[%s166 + $0x8] sm:$0xff] %v609
        %666 = vst [vmem:[%s166 + $0x10] sm:$0xff] %v635
        %667 = vst [vmem:[%s166 + $0x18] sm:$0xff] %v661
        %s668 = smul.u32 4, %s16
        %p669 = scmp.lt.s32.totalorder %s668, 7
        %s670 = scalar_select %p669, %s668, 7
        %s671 = smul.addr %s670, 8
        %s672 = scalar_lea.vmem %s2, %s671
        // Predicated region
        $region33: #{actor_critic_forward.3} parent=27 // pred_check
          %p673 = pneg %p81
        $region34: #{actor_critic_forward.3} parent=27 // pred_check_branch
          %675 = sbr.rel (%p673) target = $region36
        $region35: #{actor_critic_forward.3} parent=27 // pred_region
          %s676 = smul.u32 4, %s16
        $region36: #{actor_critic_forward.3} parent=27 // pred_fallthru
          _
      $region28: #{actor_critic_forward.3} parent=5 // pred_fallthru
        _
      %p677 = scmp.le.s32.totalorder 2, %s11
      // Predicated region
      $region37: #{actor_critic_forward.3} parent=5 // pred_check
        %p678 = pneg %p677
      $region38: #{actor_critic_forward.3} parent=5 // pred_check_branch
        %680 = sbr.rel (%p678) target = $region40
      $region39: #{actor_critic_forward.3} parent=5 // pred_region
        %s681 = ssub.s32 %s11, 2
        // Predicated region
        $region41: #{actor_critic_forward.3} parent=39 // pred_check
          %p682 = pneg %p87
        $region42: #{actor_critic_forward.3} parent=39 // pred_check_branch
          %684 = sbr.rel (%p682) target = $region44
        $region43: #{actor_critic_forward.3} parent=39 // pred_region
          %s685 = smul.u32 4, %s17
          %p686 = scmp.lt.s32.totalorder %s685, 7
          %s687 = scalar_select %p686, %s685, 7
          %s688 = smul.addr %s687, 8
          %s689 = scalar_lea.vmem %s2, %s688
        $region44: #{actor_critic_forward.3} parent=39 // pred_fallthru
          _
      $region40: #{actor_critic_forward.3} parent=5 // pred_fallthru
        _
    $region6: #{actor_critic_forward.3} parent=1 // loop_footer
      %s15 = sadd.s32 1, %s11
    $region7: #{actor_critic_forward.3} parent=1 // loop_footer_branch
      %10 = sbr.rel target = $region3
    $region8: #{actor_critic_forward.3} parent=1 // loop_exit
      _
    %690 = vsyncpa [#allocation3], 1
    %s691 = scalar_lea.sflag [#allocation3], 1
    %692 = vsyncpa %s691, 1

// kernel: actor_critic_forward.5
$region0: #{actor_critic_forward.5}
  #allocation0 [shape = 'u32[]', space=smem, size = 0x4, offset = 0x4, fixed_abs, tag = 'smem constant byte address 0x4 - core index']
  #allocation1 [shape = 'u32[72,128]{1,0:T(1,128)}', space=vmem, size = 0x9000, scoped, tag = 'internal scratch']
  #allocation2 [shape = 'f32[2,256]{1,0:T(2,128)}', space=vmem, size = 0x800, scoped, tag = 'scratch operand']
  #allocation3 [shape = 'f32[1,1]{1,0:T(1,128)S(1)}', space=vmem, size = 0x200, scoped, tag = 'scoped memory for actor_critic_forward.5']
  #allocation8 [shape = 's32[]', space=sflag, size = 0x4, offset = 0, fixed_abs, tag = 'sflag constant byte address 0x0 - dummy sync flag']
  %s0 = inlined_call_operand.hbm [shape: f32[2,256,256], index: 0, kind: input, shape index: {}]
  %s1 = inlined_call_operand.hbm [shape: f32[256,128], index: 1, kind: input, shape index: {}]
  %s2 = inlined_call_operand.vmem [shape: f32[1,128], index: 2, kind: input, shape index: {}]
  %s3 = inlined_call_operand.vmem [shape: f32[1,128], index: 3, kind: input, shape index: {}]
  %s4 = inlined_call_operand.<no memory space> [shape: f32[1,1], index: 4, kind: input, shape index: {}]
  %s5 = inlined_call_operand.vmem [shape: f32[2,1], index: 5, kind: output, shape index: {}]
  %s6 = sld [smem:[#allocation0]]
  $region69: #{actor_critic_forward.5} parent=0
    _
  %s8 = ssub.s32 1, %s6
  %s9 = scalar_select 0, %s8, %s6
  %v10 = vstv %s4
  %11 = vst [vmem:[#allocation3] sm:$0x1] %v10
  $region1: #{actor_critic_forward.5} parent=0
    #allocation4 [shape = 'u8[524288]{0}', space=vmem, size = 0x80000, scoped, tag = 'input window, operand 0']
    #allocation5 [shape = 's32[2]{0}', space=sflag, size = 0x8, scoped, tag = 'scoped memory for actor_critic_forward.5']
    #allocation6 [shape = 'u8[131072]{0}', space=vmem, size = 0x20000, scoped, tag = 'input window, operand 1, single buffered']
    #allocation7 [shape = 's32[1]{0}', space=sflag, size = 0x4, scoped, tag = 'scoped memory for actor_critic_forward.5']
    %12 = vsyncpa [#allocation5], 0
    %s13 = scalar_lea.sflag [#allocation5], 1
    %14 = vsyncpa %s13, 0
    %15 = vsyncpa [#allocation7], 0
    loop: start=0, step=1, limit=4
    $region2: #{actor_critic_forward.5} parent=1 // loop_pre_header
      _
    $region3: #{actor_critic_forward.5} parent=1 // loop_header
      %s17 = sphi 0, %s21
      %p18 = scmp.ge.s32.totalorder %s17, 4
      %s27 = sphi 0, %s29
      %s30 = sphi 0, %s27
      %s31 = sphi 0, %s30
      %s47 = sphi 0, %s31
      %s51 = sphi 0, %s51
      %s53 = sphi 0, %s51
      %s54 = sphi 0, %s53
      %s68 = sphi 0, %s54
      %s72 = sphi 0, %s72
      %s74 = sphi 0, %s72
      %s75 = sphi 0, %s74
      %s89 = sphi 0, %s75
      %s93 = sphi 0, %s93
      %s95 = sphi 0, %s93
      %s96 = sphi 0, %s95
      %s110 = sphi 0, %s96
      %s114 = sphi 0, %s114
      %s116 = sphi 0, %s114
      %s117 = sphi 0, %s116
      %s131 = sphi 0, %s117
      %s135 = sphi 0, %s135
      %s137 = sphi 0, %s135
      %s138 = sphi 0, %s137
      %s152 = sphi 0, %s138
    $region4: #{actor_critic_forward.5} parent=1 // loop_header_branch
      %20 = sbr.rel (%p18) target = $region8
    $region5: #{actor_critic_forward.5} parent=1 // loop_body
      %s22 = ssub.s32 %s17, 1
      %s23 = ssub.s32 %s17, 2
      %s24 = sadd.s32 %s17, 1
      %s25 = ssub.s32 %s17, %s24
      %p26 = scmp.eq.s32.totalorder %s25, 0
      %s28 = sadd.s32 %s27, 1
      %s29 = scalar_select %p26, %s27, %s28
      %p32 = pneg %p26
      %p33 = scmp.eq.s32.totalorder %s17, 1
      %p34 = por %p32, %p33
      %p35 = scmp.ne.s32.totalorder %s27, %s30
      %p36 = scmp.eq.s32.totalorder %s17, 0
      %p37 = por %p35, %p36
      %p38 = scmp.ne.s32.totalorder %s27, %s30
      %p39 = scmp.eq.s32.totalorder %s22, 1
      %p40 = por %p38, %p39
      %p41 = scmp.ne.s32.totalorder %s30, %s31
      %p42 = scmp.eq.s32.totalorder %s22, 0
      %p43 = por %p41, %p42
      %p44 = scmp.ne.s32.totalorder %s30, %s31
      %p45 = scmp.eq.s32.totalorder %s23, 1
      %p46 = por %p44, %p45
      %p48 = scmp.ne.s32.totalorder %s31, %s47
      %p49 = scmp.eq.s32.totalorder %s23, 0
      %p50 = por %p48, %p49
      %s52 = sadd.s32 %s51, 1
      %p55 = scmp.eq.s32.totalorder %s17, 1
      %p56 = scmp.ne.s32.totalorder %s51, %s53
      %p57 = scmp.eq.s32.totalorder %s17, 0
      %p58 = por %p56, %p57
      %p59 = scmp.ne.s32.totalorder %s51, %s53
      %p60 = scmp.eq.s32.totalorder %s22, 1
      %p61 = por %p59, %p60
      %p62 = scmp.ne.s32.totalorder %s53, %s54
      %p63 = scmp.eq.s32.totalorder %s22, 0
      %p64 = por %p62, %p63
      %p65 = scmp.ne.s32.totalorder %s53, %s54
      %p66 = scmp.eq.s32.totalorder %s23, 1
      %p67 = por %p65, %p66
      %p69 = scmp.ne.s32.totalorder %s54, %s68
      %p70 = scmp.eq.s32.totalorder %s23, 0
      %p71 = por %p69, %p70
      %s73 = sadd.s32 %s72, 1
      %p76 = scmp.eq.s32.totalorder %s17, 1
      %p77 = scmp.ne.s32.totalorder %s72, %s74
      %p78 = scmp.eq.s32.totalorder %s17, 0
      %p79 = por %p77, %p78
      %p80 = scmp.ne.s32.totalorder %s72, %s74
      %p81 = scmp.eq.s32.totalorder %s22, 1
      %p82 = por %p80, %p81
      %p83 = scmp.ne.s32.totalorder %s74, %s75
      %p84 = scmp.eq.s32.totalorder %s22, 0
      %p85 = por %p83, %p84
      %p86 = scmp.ne.s32.totalorder %s74, %s75
      %p87 = scmp.eq.s32.totalorder %s23, 1
      %p88 = por %p86, %p87
      %p90 = scmp.ne.s32.totalorder %s75, %s89
      %p91 = scmp.eq.s32.totalorder %s23, 0
      %p92 = por %p90, %p91
      %s94 = sadd.s32 %s93, 1
      %p97 = scmp.eq.s32.totalorder %s17, 1
      %p98 = scmp.ne.s32.totalorder %s93, %s95
      %p99 = scmp.eq.s32.totalorder %s17, 0
      %p100 = por %p98, %p99
      %p101 = scmp.ne.s32.totalorder %s93, %s95
      %p102 = scmp.eq.s32.totalorder %s22, 1
      %p103 = por %p101, %p102
      %p104 = scmp.ne.s32.totalorder %s95, %s96
      %p105 = scmp.eq.s32.totalorder %s22, 0
      %p106 = por %p104, %p105
      %p107 = scmp.ne.s32.totalorder %s95, %s96
      %p108 = scmp.eq.s32.totalorder %s23, 1
      %p109 = por %p107, %p108
      %p111 = scmp.ne.s32.totalorder %s96, %s110
      %p112 = scmp.eq.s32.totalorder %s23, 0
      %p113 = por %p111, %p112
      %s115 = sadd.s32 %s114, 1
      %p118 = scmp.eq.s32.totalorder %s17, 1
      %p119 = scmp.ne.s32.totalorder %s114, %s116
      %p120 = scmp.eq.s32.totalorder %s17, 0
      %p121 = por %p119, %p120
      %p122 = scmp.ne.s32.totalorder %s114, %s116
      %p123 = scmp.eq.s32.totalorder %s22, 1
      %p124 = por %p122, %p123
      %p125 = scmp.ne.s32.totalorder %s116, %s117
      %p126 = scmp.eq.s32.totalorder %s22, 0
      %p127 = por %p125, %p126
      %p128 = scmp.ne.s32.totalorder %s116, %s117
      %p129 = scmp.eq.s32.totalorder %s23, 1
      %p130 = por %p128, %p129
      %p132 = scmp.ne.s32.totalorder %s117, %s131
      %p133 = scmp.eq.s32.totalorder %s23, 0
      %p134 = por %p132, %p133
      %s136 = sadd.s32 %s135, 1
      %p139 = scmp.eq.s32.totalorder %s17, 1
      %p140 = scmp.ne.s32.totalorder %s135, %s137
      %p141 = scmp.eq.s32.totalorder %s17, 0
      %p142 = por %p140, %p141
      %p143 = scmp.ne.s32.totalorder %s135, %s137
      %p144 = scmp.eq.s32.totalorder %s22, 1
      %p145 = por %p143, %p144
      %p146 = scmp.ne.s32.totalorder %s137, %s138
      %p147 = scmp.eq.s32.totalorder %s22, 0
      %p148 = por %p146, %p147
      %p149 = scmp.ne.s32.totalorder %s137, %s138
      %p150 = scmp.eq.s32.totalorder %s23, 1
      %p151 = por %p149, %p150
      %p153 = scmp.ne.s32.totalorder %s138, %s152
      %p154 = scmp.eq.s32.totalorder %s23, 0
      %p155 = por %p153, %p154
      %p156 = scmp.le.s32.totalorder 1, %s17
      %p157 = scmp.lt.s32.totalorder %s17, 3
      %p158 = pnand %p156, %p157
      %p159 = pneg %p158
      // Predicated region
      $region9: #{actor_critic_forward.5} parent=5 // pred_check
        _
      $region10: #{actor_critic_forward.5} parent=5 // pred_check_branch
        %161 = sbr.rel (%p158) target = $region12
      $region11: #{actor_critic_forward.5} parent=5 // pred_region
        %s162 = ssub.s32 %s17, 1
        // Predicated region
        $region13: #{actor_critic_forward.5} parent=11 // pred_check
          %p163 = pneg %p64
        $region14: #{actor_critic_forward.5} parent=11 // pred_check_branch
          %165 = sbr.rel (%p163) target = $region16
        $region15: #{actor_critic_forward.5} parent=11 // pred_region
          %167 = vsyncadd [#allocation7], 0
          %s168 = sshll.u32 %s1, 4
          %s169 = int_to_ptr.hbm [resolvable:$true] %s168
          %s170 = sshll.u32 [#allocation6], 4
          %s171 = int_to_ptr.vmem [resolvable:$true] %s170
          %176 = dma.hbm_to_vmem [thread:$0]  %s169, 4096, %s171, [#allocation7], 128, 128, 8
        $region16: #{actor_critic_forward.5} parent=11 // pred_fallthru
          _
        // Predicated region
        $region17: #{actor_critic_forward.5} parent=11 // pred_check
          %p177 = pneg %p85
        $region18: #{actor_critic_forward.5} parent=11 // pred_check_branch
          %179 = sbr.rel (%p177) target = $region20
        $region19: #{actor_critic_forward.5} parent=11 // pred_region
          _
        $region20: #{actor_critic_forward.5} parent=11 // pred_fallthru
          _
        // Predicated region
        $region21: #{actor_critic_forward.5} parent=11 // pred_check
          %p180 = pneg %p106
        $region22: #{actor_critic_forward.5} parent=11 // pred_check_branch
          %182 = sbr.rel (%p180) target = $region24
        $region23: #{actor_critic_forward.5} parent=11 // pred_region
          _
        $region24: #{actor_critic_forward.5} parent=11 // pred_fallthru
          _
        // Predicated region
        $region25: #{actor_critic_forward.5} parent=11 // pred_check
          %p183 = pneg %p127
        $region26: #{actor_critic_forward.5} parent=11 // pred_check_branch
          %185 = sbr.rel (%p183) target = $region28
        $region27: #{actor_critic_forward.5} parent=11 // pred_region
          _
        $region28: #{actor_critic_forward.5} parent=11 // pred_fallthru
          _
      $region12: #{actor_critic_forward.5} parent=5 // pred_fallthru
        _
      %p186 = scmp.lt.s32.totalorder %s17, 2
      // Predicated region
      $region29: #{actor_critic_forward.5} parent=5 // pred_check
        %p187 = pneg %p186
      $region30: #{actor_critic_forward.5} parent=5 // pred_check_branch
        %189 = sbr.rel (%p187) target = $region32
      $region31: #{actor_critic_forward.5} parent=5 // pred_region
        // Predicated region
        $region33: #{actor_critic_forward.5} parent=31 // pred_check
          %p190 = pneg %p37
        $region34: #{actor_critic_forward.5} parent=31 // pred_check_branch
          %192 = sbr.rel (%p190) target = $region36
        $region35: #{actor_critic_forward.5} parent=31 // pred_region
          #allocation9 [shape = 'u32[6]{0}', space=smem, size = 0x18, scoped, tag = 'DMA stride descriptor']
          %s193 = sand.u32 %s27, 1
          %s194 = scalar_lea.sflag [#allocation5], %s193
          %s195 = sand.u32 %s27, 1
          %s196 = smul.addr %s195, 512
          %s197 = scalar_lea.vmem [#allocation4], %s196
          %s198 = smul.u32 16, %s17
          %200 = vsyncadd %s194, 0
          %s201 = smul.addr %s198, 2
          %s202 = smul.addr %s201, 8
          %s203 = scalar_lea.hbm %s0, %s202
          %s205 = sshll.u32 1, 14
          %s206 = sxor.u32 4294967295, %s205
          %s208 = sld [smem:[#allocation0]]
          %s209 = sadd.s32 2, %s208
          %s211 = sshll.u32 7, 26
          %s212 = sxor.u32 4294967295, %s211
          %s213 = sand.u32 0, %s212
          %s214 = sshll.u32 %s209, 26
          %s215 = sor.u32 %s213, %s214
          %s216 = sshll.u32 %s203, 4
          %s217 = int_to_ptr.hbm [resolvable:$true] %s216
          %s218 = sshll.u32 %s197, 4
          %s219 = int_to_ptr.vmem [resolvable:$true] %s218
          %225 = sst [smem:[#allocation9]] 8192
          %s226 = scalar_lea.smem [#allocation9], 1
          %227 = sst [smem:[%s226]] 4096
          %s228 = scalar_lea.smem [#allocation9], 2
          %229 = sst [smem:[%s228]] 16
          %s230 = scalar_lea.smem [#allocation9], 3
          %231 = sst [smem:[%s230]] 256
          %s232 = scalar_lea.smem [#allocation9], 4
          %233 = sst [smem:[%s232]] 256
          %s234 = scalar_lea.smem [#allocation9], 5
          %235 = sst [smem:[%s234]] 16
          %237 = dma.general %s217, 8192, %s219, %s194, [#allocation8], [#allocation9], %s215, 0
        $region36: #{actor_critic_forward.5} parent=31 // pred_fallthru
          _
      $region32: #{actor_critic_forward.5} parent=5 // pred_fallthru
        _
      %p238 = scmp.le.s32.totalorder 1, %s17
      %p239 = scmp.lt.s32.totalorder %s17, 3
      %p240 = pnand %p238, %p239
      %p241 = pneg %p240
      // Predicated region
      $region37: #{actor_critic_forward.5} parent=5 // pred_check
        _
      $region38: #{actor_critic_forward.5} parent=5 // pred_check_branch
        %243 = sbr.rel (%p240) target = $region40
      $region39: #{actor_critic_forward.5} parent=5 // pred_region
        %s244 = ssub.s32 %s17, 1
        %s245 = sand.u32 %s30, 1
        %s246 = scalar_lea.sflag [#allocation5], %s245
        %s247 = sand.u32 %s30, 1
        %s248 = smul.addr %s247, 512
        %s249 = scalar_lea.vmem [#allocation4], %s248
        // Predicated region
        $region41: #{actor_critic_forward.5} parent=39 // pred_check
          %p250 = pneg %p43
        $region42: #{actor_critic_forward.5} parent=39 // pred_check_branch
          %252 = sbr.rel (%p250) target = $region44
        $region43: #{actor_critic_forward.5} parent=39 // pred_region
          %254 = dma.done %s246, 8192
        $region44: #{actor_critic_forward.5} parent=39 // pred_fallthru
          _
        // Predicated region
        $region45: #{actor_critic_forward.5} parent=39 // pred_check
          %p255 = pneg %p64
        $region46: #{actor_critic_forward.5} parent=39 // pred_check_branch
          %257 = sbr.rel (%p255) target = $region48
        $region47: #{actor_critic_forward.5} parent=39 // pred_region
          %259 = dma.done [#allocation7], 4096
        $region48: #{actor_critic_forward.5} parent=39 // pred_fallthru
          _
        %s260 = sand.u32 %s30, 1
        %s261 = scalar_lea.sflag [#allocation5], %s260
        %s262 = sand.u32 %s30, 1
        %s263 = smul.addr %s262, 512
        %s264 = scalar_lea.vmem [#allocation4], %s263
        %p265 = pneg %p43
        %p266 = pneg %p40
        %p267 = pneg %p64
        %p268 = pneg %p61
        %p269 = pneg %p85
        %p270 = pneg %p82
        %p271 = pneg %p106
        %p272 = pneg %p103
        %p273 = pneg %p127
        %p274 = pneg %p124
        %p275 = pneg %p148
        %p276 = pneg %p145
        %s277 = smul.u32 16, %s22
        %p278 = scmp.eq.s32.totalorder %s22, 0
        // Predicated region
        $region49: #{actor_critic_forward.5} parent=39 // pred_check
          %p279 = pneg %p278
        $region50: #{actor_critic_forward.5} parent=39 // pred_check_branch
          %281 = sbr.rel (%p279) target = $region52
        $region51: #{actor_critic_forward.5} parent=39 // pred_region
          %282 = vst [vmem:[#allocation2] sm:$0xf] 0.0
        $region52: #{actor_critic_forward.5} parent=39 // pred_fallthru
          _
        %v283 = vld [vmem:[#allocation2] sm:$0xf]
        %v284 = vld [vmem:[%s249] sm:$0xff]
        %v285 = vld [vmem:[%s249 + $0x8] sm:$0xff]
        %v286 = vld [vmem:[%s249 + $0x10] sm:$0xff]
        %v287 = vld [vmem:[%s249 + $0x18] sm:$0xff]
        %v288 = vld [vmem:[%s249 + $0x20] sm:$0xff]
        %v289 = vld [vmem:[%s249 + $0x28] sm:$0xff]
        %v290 = vld [vmem:[%s249 + $0x30] sm:$0xff]
        %v291 = vld [vmem:[%s249 + $0x38] sm:$0xff]
        %v292 = vld [vmem:[%s249 + $0x40] sm:$0xff]
        %v293 = vld [vmem:[%s249 + $0x48] sm:$0xff]
        %v294 = vld [vmem:[%s249 + $0x50] sm:$0xff]
        %v295 = vld [vmem:[%s249 + $0x58] sm:$0xff]
        %v296 = vld [vmem:[%s249 + $0x60] sm:$0xff]
        %v297 = vld [vmem:[%s249 + $0x68] sm:$0xff]
        %v298 = vld [vmem:[%s249 + $0x70] sm:$0xff]
        %v299 = vld [vmem:[%s249 + $0x78] sm:$0xff]
        %v300 = vld [vmem:[%s249 + $0x80] sm:$0xff]
        %v301 = vld [vmem:[%s249 + $0x88] sm:$0xff]
        %v302 = vld [vmem:[%s249 + $0x90] sm:$0xff]
        %v303 = vld [vmem:[%s249 + $0x98] sm:$0xff]
        %v304 = vld [vmem:[%s249 + $0xa0] sm:$0xff]
        %v305 = vld [vmem:[%s249 + $0xa8] sm:$0xff]
        %v306 = vld [vmem:[%s249 + $0xb0] sm:$0xff]
        %v307 = vld [vmem:[%s249 + $0xb8] sm:$0xff]
        %v308 = vld [vmem:[%s249 + $0xc0] sm:$0xff]
        %v309 = vld [vmem:[%s249 + $0xc8] sm:$0xff]
        %v310 = vld [vmem:[%s249 + $0xd0] sm:$0xff]
        %v311 = vld [vmem:[%s249 + $0xd8] sm:$0xff]
        %v312 = vld [vmem:[%s249 + $0xe0] sm:$0xff]
        %v313 = vld [vmem:[%s249 + $0xe8] sm:$0xff]
        %v314 = vld [vmem:[%s249 + $0xf0] sm:$0xff]
        %v315 = vld [vmem:[%s249 + $0xf8] sm:$0xff]
        %v316 = vld [vmem:[%s249 + $0x100] sm:$0xff]
        %v317 = vld [vmem:[%s249 + $0x108] sm:$0xff]
        %v318 = vld [vmem:[%s249 + $0x110] sm:$0xff]
        %v319 = vld [vmem:[%s249 + $0x118] sm:$0xff]
        %v320 = vld [vmem:[%s249 + $0x120] sm:$0xff]
        %v321 = vld [vmem:[%s249 + $0x128] sm:$0xff]
        %v322 = vld [vmem:[%s249 + $0x130] sm:$0xff]
        %v323 = vld [vmem:[%s249 + $0x138] sm:$0xff]
        %v324 = vld [vmem:[%s249 + $0x140] sm:$0xff]
        %v325 = vld [vmem:[%s249 + $0x148] sm:$0xff]
        %v326 = vld [vmem:[%s249 + $0x150] sm:$0xff]
        %v327 = vld [vmem:[%s249 + $0x158] sm:$0xff]
        %v328 = vld [vmem:[%s249 + $0x160] sm:$0xff]
        %v329 = vld [vmem:[%s249 + $0x168] sm:$0xff]
        %v330 = vld [vmem:[%s249 + $0x170] sm:$0xff]
        %v331 = vld [vmem:[%s249 + $0x178] sm:$0xff]
        %v332 = vld [vmem:[%s249 + $0x180] sm:$0xff]
        %v333 = vld [vmem:[%s249 + $0x188] sm:$0xff]
        %v334 = vld [vmem:[%s249 + $0x190] sm:$0xff]
        %v335 = vld [vmem:[%s249 + $0x198] sm:$0xff]
        %v336 = vld [vmem:[%s249 + $0x1a0] sm:$0xff]
        %v337 = vld [vmem:[%s249 + $0x1a8] sm:$0xff]
        %v338 = vld [vmem:[%s249 + $0x1b0] sm:$0xff]
        %v339 = vld [vmem:[%s249 + $0x1b8] sm:$0xff]
        %v340 = vld [vmem:[%s249 + $0x1c0] sm:$0xff]
        %v341 = vld [vmem:[%s249 + $0x1c8] sm:$0xff]
        %v342 = vld [vmem:[%s249 + $0x1d0] sm:$0xff]
        %v343 = vld [vmem:[%s249 + $0x1d8] sm:$0xff]
        %v344 = vld [vmem:[%s249 + $0x1e0] sm:$0xff]
        %v345 = vld [vmem:[%s249 + $0x1e8] sm:$0xff]
        %v346 = vld [vmem:[%s249 + $0x1f0] sm:$0xff]
        %v347 = vld [vmem:[%s249 + $0x1f8] sm:$0xff]
        %v348 = vadd.f32 %v284, %v286
        %v349 = vadd.f32 %v348, %v288
        %v350 = vadd.f32 %v349, %v290
        %v351 = vadd.f32 %v350, %v292
        %v352 = vadd.f32 %v351, %v294
        %v353 = vadd.f32 %v352, %v296
        %v354 = vadd.f32 %v353, %v298
        %v355 = vadd.f32 %v354, %v300
        %v356 = vadd.f32 %v355, %v302
        %v357 = vadd.f32 %v356, %v304
        %v358 = vadd.f32 %v357, %v306
        %v359 = vadd.f32 %v358, %v308
        %v360 = vadd.f32 %v359, %v310
        %v361 = vadd.f32 %v360, %v312
        %v362 = vadd.f32 %v361, %v314
        %v363 = vrot.slane %v362, 4
        %v364 = vadd.f32 %v362, %v363
        %v365 = vrot.slane %v364, 2
        %v366 = vadd.f32 %v364, %v365
        %v367 = vrot.slane %v366, 1
        %v368 = vadd.f32 %v366, %v367
        %v369 = vadd.f32 %v285, %v287
        %v370 = vadd.f32 %v369, %v289
        %v371 = vadd.f32 %v370, %v291
        %v372 = vadd.f32 %v371, %v293
        %v373 = vadd.f32 %v372, %v295
        %v374 = vadd.f32 %v373, %v297
        %v375 = vadd.f32 %v374, %v299
        %v376 = vadd.f32 %v375, %v301
        %v377 = vadd.f32 %v376, %v303
        %v378 = vadd.f32 %v377, %v305
        %v379 = vadd.f32 %v378, %v307
        %v380 = vadd.f32 %v379, %v309
        %v381 = vadd.f32 %v380, %v311
        %v382 = vadd.f32 %v381, %v313
        %v383 = vadd.f32 %v382, %v315
        %v384 = vrot.slane %v383, 4
        %v385 = vadd.f32 %v383, %v384
        %v386 = vrot.slane %v385, 2
        %v387 = vadd.f32 %v385, %v386
        %v388 = vrot.slane %v387, 1
        %v389 = vadd.f32 %v387, %v388
        %v390 = vadd.f32 %v316, %v318
        %v391 = vadd.f32 %v390, %v320
        %v392 = vadd.f32 %v391, %v322
        %v393 = vadd.f32 %v392, %v324
        %v394 = vadd.f32 %v393, %v326
        %v395 = vadd.f32 %v394, %v328
        %v396 = vadd.f32 %v395, %v330
        %v397 = vadd.f32 %v396, %v332
        %v398 = vadd.f32 %v397, %v334
        %v399 = vadd.f32 %v398, %v336
        %v400 = vadd.f32 %v399, %v338
        %v401 = vadd.f32 %v400, %v340
        %v402 = vadd.f32 %v401, %v342
        %v403 = vadd.f32 %v402, %v344
        %v404 = vadd.f32 %v403, %v346
        %v405 = vrot.slane %v404, 4
        %v406 = vadd.f32 %v404, %v405
        %v407 = vrot.slane %v406, 2
        %v408 = vadd.f32 %v406, %v407
        %v409 = vrot.slane %v408, 1
        %v410 = vadd.f32 %v408, %v409
        %v411 = vadd.f32 %v317, %v319
        %v412 = vadd.f32 %v411, %v321
        %v413 = vadd.f32 %v412, %v323
        %v414 = vadd.f32 %v413, %v325
        %v415 = vadd.f32 %v414, %v327
        %v416 = vadd.f32 %v415, %v329
        %v417 = vadd.f32 %v416, %v331
        %v418 = vadd.f32 %v417, %v333
        %v419 = vadd.f32 %v418, %v335
        %v420 = vadd.f32 %v419, %v337
        %v421 = vadd.f32 %v420, %v339
        %v422 = vadd.f32 %v421, %v341
        %v423 = vadd.f32 %v422, %v343
        %v424 = vadd.f32 %v423, %v345
        %v425 = vadd.f32 %v424, %v347
        %v426 = vrot.slane %v425, 4
        %v427 = vadd.f32 %v425, %v426
        %v428 = vrot.slane %v427, 2
        %v429 = vadd.f32 %v427, %v428
        %v430 = vrot.slane %v429, 1
        %v431 = vadd.f32 %v429, %v430
        %v436 = vrot.slane %v389, 6
        %v437 = vrot.slane %v431, 6
        %vm438 = vcmask 1041408
        %v439 = vsel %vm438, %v368, %v436
        %v440 = vsel %vm438, %v410, %v437
        %vm441 = vcmask 1044484
        %v442 = vsel %vm441, %v439, %v439
        %vm443 = vcmask 1046534
        %v444 = vsel %vm443, %v439, %v442
        %v445 = vrot.slane %v440, 7
        %vm446 = vcmask 1041409
        %v447 = vsel %vm446, %v445, %v444
        %vm448 = vcmask 1043459
        %v449 = vsel %vm448, %v445, %v447
        %vm450 = vcmask 1045509
        %v451 = vsel %vm450, %v445, %v449
        %vm452 = vcmask 1047559
        %v453 = vsel %vm452, %v445, %v451
        %v455 = vadd.f32 %v283, %v453
        %456 = vst [vmem:[#allocation2] sm:$0xf] %v455
        %p457 = scmp.eq.s32.totalorder %s22, 1
        // Predicated region
        $region53: #{actor_critic_forward.5} parent=39 // pred_check
          %p458 = pneg %p457
        $region54: #{actor_critic_forward.5} parent=39 // pred_check_branch
          %460 = sbr.rel (%p458) target = $region56
        $region55: #{actor_critic_forward.5} parent=39 // pred_region
          %v461 = vld [vmem:[#allocation2] sm:$0xf]
          %v462 = vmul.f32 %v461, 0.00390625
          %v463 = vld [vmem:[#allocation6] sm:$0xff]
          %v464 = vld [vmem:[#allocation6 + $0x8] sm:$0xff]
          %v465 = vld [vmem:[#allocation6 + $0x10] sm:$0xff]
          %v466 = vld [vmem:[#allocation6 + $0x18] sm:$0xff]
          %v467 = vld [vmem:[#allocation6 + $0x20] sm:$0xff]
          %v468 = vld [vmem:[#allocation6 + $0x28] sm:$0xff]
          %v469 = vld [vmem:[#allocation6 + $0x30] sm:$0xff]
          %v470 = vld [vmem:[#allocation6 + $0x38] sm:$0xff]
          %v471 = vld [vmem:[#allocation6 + $0x40] sm:$0xff]
          %v472 = vld [vmem:[#allocation6 + $0x48] sm:$0xff]
          %v473 = vld [vmem:[#allocation6 + $0x50] sm:$0xff]
          %v474 = vld [vmem:[#allocation6 + $0x58] sm:$0xff]
          %v475 = vld [vmem:[#allocation6 + $0x60] sm:$0xff]
          %v476 = vld [vmem:[#allocation6 + $0x68] sm:$0xff]
          %v477 = vld [vmem:[#allocation6 + $0x70] sm:$0xff]
          %v478 = vld [vmem:[#allocation6 + $0x78] sm:$0xff]
          %v479 = vld [vmem:[#allocation6 + $0x80] sm:$0xff]
          %v480 = vld [vmem:[#allocation6 + $0x88] sm:$0xff]
          %v481 = vld [vmem:[#allocation6 + $0x90] sm:$0xff]
          %v482 = vld [vmem:[#allocation6 + $0x98] sm:$0xff]
          %v483 = vld [vmem:[#allocation6 + $0xa0] sm:$0xff]
          %v484 = vld [vmem:[#allocation6 + $0xa8] sm:$0xff]
          %v485 = vld [vmem:[#allocation6 + $0xb0] sm:$0xff]
          %v486 = vld [vmem:[#allocation6 + $0xb8] sm:$0xff]
          %v487 = vld [vmem:[#allocation6 + $0xc0] sm:$0xff]
          %v488 = vld [vmem:[#allocation6 + $0xc8] sm:$0xff]
          %v489 = vld [vmem:[#allocation6 + $0xd0] sm:$0xff]
          %v490 = vld [vmem:[#allocation6 + $0xd8] sm:$0xff]
          %v491 = vld [vmem:[#allocation6 + $0xe0] sm:$0xff]
          %v492 = vld [vmem:[#allocation6 + $0xe8] sm:$0xff]
          %v493 = vld [vmem:[#allocation6 + $0xf0] sm:$0xff]
          %v494 = vld [vmem:[#allocation6 + $0xf8] sm:$0xff]
          %v495 = vld [vmem:[%s2] sm:$0x1]
          %v497 = vperm.slane %v495, 0
          %500 = vst [vmem:[#allocation1] ss:$4 sm:$0xff] %v462
          %v501 = vld.sshfl [vmem:[#allocation1] sm:$0xff pattern:$0x73625140]
          %v502 = vld.sshfl [vmem:[#allocation1 + $0x8] sm:$0xff pattern:$0x73625140]
          %505 = vmatpush.msra.mxu0 %v478
          %506 = vmatpush.msra.mxu0 %v477
          %507 = vmatpush.msra.mxu0 %v476
          %508 = vmatpush.msra.mxu0 %v475
          %509 = vmatpush.msra.mxu0 %v474
          %510 = vmatpush.msra.mxu0 %v473
          %511 = vmatpush.msra.mxu0 %v472
          %512 = vmatpush.msra.mxu0 %v471
          %513 = vmatpush.msra.mxu0 %v470
          %514 = vmatpush.msra.mxu0 %v469
          %515 = vmatpush.msra.mxu0 %v468
          %516 = vmatpush.msra.mxu0 %v467
          %517 = vmatpush.msra.mxu0 %v466
          %518 = vmatpush.msra.mxu0 %v465
          %519 = vmatpush.msra.mxu0 %v464
          %520 = vmatpush.msra.mxu0 %v463
          %521 = vmatmul.f32.gmra.mxu0 %v501
          %v522 = vpop.f32.mrf.mxu0
          %v523 = vadd.f32 %v497, %v522
          %524 = vdwg.mxu0
          %525 = vmatpush.msra.mxu0 %v494
          %526 = vmatpush.msra.mxu0 %v493
          %527 = vmatpush.msra.mxu0 %v492
          %528 = vmatpush.msra.mxu0 %v491
          %529 = vmatpush.msra.mxu0 %v490
          %530 = vmatpush.msra.mxu0 %v489
          %531 = vmatpush.msra.mxu0 %v488
          %532 = vmatpush.msra.mxu0 %v487
          %533 = vmatpush.msra.mxu0 %v486
          %534 = vmatpush.msra.mxu0 %v485
          %535 = vmatpush.msra.mxu0 %v484
          %536 = vmatpush.msra.mxu0 %v483
          %537 = vmatpush.msra.mxu0 %v482
          %538 = vmatpush.msra.mxu0 %v481
          %539 = vmatpush.msra.mxu0 %v480
          %540 = vmatpush.msra.mxu0 %v479
          %541 = vmatmul.f32.gmra.mxu0 %v502
          %v542 = vpop.f32.mrf.mxu0
          %v543 = vadd.f32 %v523, %v542
          %544 = vdwg.mxu0
          %v545 = vtanh.pop %v543
          %v546 = vld [vmem:[%s3] sm:$0x1]
          %v548 = vperm.slane %v546, 0
          %v550 = vmul.f32 %v545, %v548
          %v551 = vsel %vm438, %v550, 0.0
          %552 = vadd.xlane.f32.xlu0 %v551
          %v553 = vpop.xlane.xlu0 %552
          %v554 = vld [vmem:[#allocation3] sm:$0x1]
          %v556 = vperm.slane %v554, 0
          %v558 = vadd.f32 %v553, %v556
          %vm559 = vcmask 1024
          %560 = vst.msk [vmem:[%s5] sm:$0x3] %vm559, %v558
        $region56: #{actor_critic_forward.5} parent=39 // pred_fallthru
          _
        // Predicated region
        $region57: #{actor_critic_forward.5} parent=39 // pred_check
          %p561 = pneg %p145
        $region58: #{actor_critic_forward.5} parent=39 // pred_check_branch
          %563 = sbr.rel (%p561) target = $region60
        $region59: #{actor_critic_forward.5} parent=39 // pred_region
          _
        $region60: #{actor_critic_forward.5} parent=39 // pred_fallthru
          _
        // Predicated region
        $region61: #{actor_critic_forward.5} parent=39 // pred_check
          %p564 = pneg %p145
        $region62: #{actor_critic_forward.5} parent=39 // pred_check_branch
          %566 = sbr.rel (%p564) target = $region64
        $region63: #{actor_critic_forward.5} parent=39 // pred_region
          _
        $region64: #{actor_critic_forward.5} parent=39 // pred_fallthru
          _
      $region40: #{actor_critic_forward.5} parent=5 // pred_fallthru
        _
      %p567 = scmp.le.s32.totalorder 2, %s17
      // Predicated region
      $region65: #{actor_critic_forward.5} parent=5 // pred_check
        %p568 = pneg %p567
      $region66: #{actor_critic_forward.5} parent=5 // pred_check_branch
        %570 = sbr.rel (%p568) target = $region68
      $region67: #{actor_critic_forward.5} parent=5 // pred_region
        %s571 = ssub.s32 %s17, 2
      $region68: #{actor_critic_forward.5} parent=5 // pred_fallthru
        _
    $region6: #{actor_critic_forward.5} parent=1 // loop_footer
      %s21 = sadd.s32 1, %s17
    $region7: #{actor_critic_forward.5} parent=1 // loop_footer_branch
      %16 = sbr.rel target = $region3
    $region8: #{actor_critic_forward.5} parent=1 // loop_exit
      _
    %572 = vsyncpa [#allocation5], 1
    %s573 = scalar_lea.sflag [#allocation5], 1
    %574 = vsyncpa %s573, 1
    %575 = vsyncpa [#allocation7], 1

</llo_original>
